<compile_context>
chip_gen: v7x
topology: tpu7x:2x2x1
jax: 0.10.0
libtpu: 0.0.40
codegen_flags: <defaults>
</compile_context>

<pallas_src>
import functools

import jax
import jax.numpy as jnp
from jax.experimental import pallas as pl
from jax.experimental.pallas import tpu as pltpu


def _round_up(x, m):
    return (x + m - 1) // m * m


def decoder_kernel(
    xc_ref,    # [Bp, Ep+Hp]    bf16  concat(embedded, context), padded   (resident)
    h_ref,     # [Bp, Hp]       f32   previous hidden, padded             (resident)
    wih_ref,   # [Ep+Hp, 3Hp]   bf16  GRU W_ih^T, gate order r|z|n        (resident)
    whh_ref,   # [Hp, 3Hp]      bf16  GRU W_hh^T                          (resident)
    bih_ref,   # [1, 3Hp]       f32                                       (resident)
    bhh_ref,   # [1, 3Hp]       f32                                       (resident)
    wf_ref,    # [Ep+2Hp, Tv]   bf16  fused fc_out slice (emb|ctx|h_new)  (V-tiled)
    bfc_ref,   # [1, Tv]        f32                                       (V-tiled)
    pred_ref,  # out [Bp, Tv]   f32                                       (V-tiled)
    hnew_ref,  # out [Bp, Hp]   f32                                       (resident)
    lhs_ref,   # scratch VMEM [Bp, Ep+2Hp] bf16: fused fc LHS [emb|ctx|h_new]
):
    # GRU step + fused-LHS construction: only on the first vocab tile; the
    # scratch is reused by all later tiles (requires sequential V axis).
    @pl.when(pl.program_id(0) == 0)
    def _():
        hp = h_ref.shape[1]
        ehp = xc_ref.shape[1]                  # Ep + Hp (128-aligned)
        xc = xc_ref[...]                       # bf16
        h = h_ref[...]                         # f32 (element-wise math stays f32)
        gx = jnp.dot(xc, wih_ref[...], preferred_element_type=jnp.float32) + bih_ref[...]
        gh = (jnp.dot(h.astype(jnp.bfloat16), whh_ref[...],
                      preferred_element_type=jnp.float32) + bhh_ref[...])
        # PyTorch GRU, gate order r | z | n; slices are 128-aligned (Hp % 128 == 0).
        r = jax.nn.sigmoid(gx[:, 0 * hp:1 * hp] + gh[:, 0 * hp:1 * hp])
        z = jax.nn.sigmoid(gx[:, 1 * hp:2 * hp] + gh[:, 1 * hp:2 * hp])
        n = jnp.tanh(gx[:, 2 * hp:3 * hp] + r * gh[:, 2 * hp:3 * hp])
        h_new = (1.0 - z) * n + z * h
        hnew_ref[...] = h_new
        # Fused fc LHS: [emb | ctx] straight from xc, h_new appended (bf16).
        lhs_ref[:, :ehp] = xc
        lhs_ref[:, ehp:] = h_new.astype(jnp.bfloat16)

    # fc_out for this vocab tile: ONE contraction against the fused weight slice.
    pred_ref[...] = (
        jnp.dot(lhs_ref[...], wf_ref[...], preferred_element_type=jnp.float32)
        + bfc_ref[...]
    ).astype(pred_ref.dtype)


def init_params(key, output_dim, embedding_dim, hidden_dim):
    ks = jax.random.split(key, 8)
    s = 0.1
    return {
        "embedding": jax.random.normal(ks[0], (output_dim, embedding_dim), jnp.float32) * s,
        # GRU weights in PyTorch layout: [3H, in]
        "w_ih": jax.random.normal(ks[1], (3 * hidden_dim, embedding_dim + hidden_dim), jnp.float32) * s,
        "w_hh": jax.random.normal(ks[2], (3 * hidden_dim, hidden_dim), jnp.float32) * s,
        "b_ih": jax.random.normal(ks[3], (3 * hidden_dim,), jnp.float32) * s,
        "b_hh": jax.random.normal(ks[4], (3 * hidden_dim,), jnp.float32) * s,
        # fc_out: [V, E + 2H]
        "w_fc": jax.random.normal(ks[5], (output_dim, embedding_dim + 2 * hidden_dim), jnp.float32) * s,
        "b_fc": jax.random.normal(ks[6], (output_dim,), jnp.float32) * s,
    }


def prepare_weights(params, embedding_dim, hidden_dim, output_dim, tile_v):
    """One-time: pad / transpose / fuse / bf16-cast the PyTorch-layout weights."""
    E, H, V = embedding_dim, hidden_dim, output_dim
    Ep = _round_up(E, 128)
    Hp = _round_up(H, 128)
    Vp = _round_up(V, tile_v)
    f32 = jnp.float32

    # GRU weights: gate-padded rows (each gate an Hp block), columns [emb(Ep)|ctx(Hp)].
    w_ih_p = jnp.zeros((3 * Hp, Ep + Hp), f32)
    w_hh_p = jnp.zeros((3 * Hp, Hp), f32)
    b_ih_p = jnp.zeros((3 * Hp,), f32)
    b_hh_p = jnp.zeros((3 * Hp,), f32)
    for g in range(3):
        blk = params["w_ih"][g * H:(g + 1) * H]                             # [H, E+H]
        w_ih_p = w_ih_p.at[g * Hp:g * Hp + H, :E].set(blk[:, :E])           # emb part
        w_ih_p = w_ih_p.at[g * Hp:g * Hp + H, Ep:Ep + H].set(blk[:, E:])    # ctx part
        w_hh_p = w_hh_p.at[g * Hp:g * Hp + H, :H].set(params["w_hh"][g * H:(g + 1) * H])
        b_ih_p = b_ih_p.at[g * Hp:g * Hp + H].set(params["b_ih"][g * H:(g + 1) * H])
        b_hh_p = b_hh_p.at[g * Hp:g * Hp + H].set(params["b_hh"][g * H:(g + 1) * H])

    # Fused fc_out weight: rows ordered [emb(Ep) | ctx(Hp) | h_new(Hp)], cols Vp.
    # (PyTorch w_fc columns are [emb | h_new | ctx]; we reorder to match the
    #  in-kernel LHS layout so each vocab tile is a single contraction.)
    w_fc_t = params["w_fc"].T                                               # [E+2H, V]
    wf = jnp.zeros((Ep + 2 * Hp, Vp), f32)
    wf = wf.at[:E, :V].set(w_fc_t[:E])                                      # emb
    wf = wf.at[Ep:Ep + H, :V].set(w_fc_t[E + H:E + 2 * H])                  # ctx
    wf = wf.at[Ep + Hp:Ep + Hp + H, :V].set(w_fc_t[E:E + H])                # h_new
    bfc = jnp.zeros((Vp,), f32).at[:V].set(params["b_fc"])

    return {
        "embedding": params["embedding"],                  # gather stays f32
        "wih": w_ih_p.T.astype(jnp.bfloat16),              # [Ep+Hp, 3Hp]
        "whh": w_hh_p.T.astype(jnp.bfloat16),              # [Hp, 3Hp]
        "bih": b_ih_p[None, :],                            # [1, 3Hp] f32
        "bhh": b_hh_p[None, :],                            # [1, 3Hp] f32
        "wf": wf.astype(jnp.bfloat16),                     # [Ep+2Hp, Vp] fused
        "bfc": bfc[None, :],                               # [1, Vp] f32
    }


@functools.partial(jax.jit,
                   static_argnames=("embedding_dim", "hidden_dim", "output_dim", "tile_v"))
def decoder_forward(prepared, token_ids, hidden, context,
                    embedding_dim, hidden_dim, output_dim, tile_v):
    """token_ids: [B] int32; hidden, context: [1, B, H].
    Returns (prediction [B, V], hidden [1, B, H]) matching the PyTorch forward."""
    E, H, V = embedding_dim, hidden_dim, output_dim
    Hp = prepared["whh"].shape[0]
    Ep = prepared["wih"].shape[0] - Hp
    Vp = prepared["wf"].shape[1]
    B = token_ids.shape[0]
    Bp = _round_up(B, 16)   # fill a packed bf16 sublane tile on the MXU

    # Glue: embedding gather (dropout = identity in eval), squeeze seq=1 axis,
    # zero-pad rows to Bp and lanes to Ep/Hp, fuse emb|ctx into one GRU operand.
    embedded = jnp.take(prepared["embedding"], token_ids, axis=0)            # [B, E]
    xc = jnp.zeros((Bp, Ep + Hp), jnp.float32)
    xc = xc.at[:B, :E].set(embedded)
    xc = xc.at[:B, Ep:Ep + H].set(context[0])
    xc = xc.astype(jnp.bfloat16)                                             # [Bp, Ep+Hp]
    h0 = jnp.zeros((Bp, Hp), jnp.float32).at[:B, :H].set(hidden[0])          # [Bp, Hp]

    n_tiles = Vp // tile_v
    resident = lambda shape: pl.BlockSpec(shape, lambda j: (0, 0))
    tiled = lambda shape: pl.BlockSpec(shape, lambda j: (0, j))

    grid_spec = pltpu.PrefetchScalarGridSpec(
        num_scalar_prefetch=0,
        grid=(n_tiles,),
        in_specs=[
            resident((Bp, Ep + Hp)),        # xc
            resident((Bp, Hp)),             # h0
            resident((Ep + Hp, 3 * Hp)),    # wih
            resident((Hp, 3 * Hp)),         # whh
            resident((1, 3 * Hp)),          # bih
            resident((1, 3 * Hp)),          # bhh
            tiled((Ep + 2 * Hp, tile_v)),   # wf   (streamed over V, double-buffered)
            tiled((1, tile_v)),             # bfc
        ],
        out_specs=(
            tiled((Bp, tile_v)),            # pred
            resident((Bp, Hp)),             # h_new (written once at j == 0)
        ),
        scratch_shapes=[pltpu.VMEM((Bp, Ep + 2 * Hp), jnp.bfloat16)],
    )

    # Advisory cost so XLA schedules the gather/padding ops around the kernel.
    fc_flops = 2 * Bp * (Ep + 2 * Hp) * Vp
    gru_flops = 2 * Bp * (Ep + Hp) * 3 * Hp + 2 * Bp * Hp * 3 * Hp
    bytes_accessed = (
        (Ep + 2 * Hp) * Vp * 2 + Vp * 4                      # fused fc weight + bias
        + ((Ep + Hp) + Hp) * 3 * Hp * 2 + 2 * 3 * Hp * 4     # GRU weights + biases
        + Bp * (Ep + Hp) * 2 + Bp * Hp * 4                   # activations in
        + Bp * Vp * 4 + Bp * Hp * 4                          # outputs
    )
    cost = pl.CostEstimate(flops=fc_flops + gru_flops,
                           transcendentals=3 * Bp * Hp,
                           bytes_accessed=bytes_accessed)

    pred_p, hnew_p = pl.pallas_call(
        decoder_kernel,
        out_shape=(
            jax.ShapeDtypeStruct((Bp, Vp), jnp.float32),
            jax.ShapeDtypeStruct((Bp, Hp), jnp.float32),
        ),
        grid_spec=grid_spec,
        compiler_params=pltpu.CompilerParams(
            # The GRU / fused-LHS scratch is written only at j == 0 and reused by
            # all later tiles, so the V axis must stay sequential ("arbitrary").
            dimension_semantics=("arbitrary",),
            vmem_limit_bytes=32 * 1024 * 1024,
        ),
        cost_estimate=cost,
    )(xc, h0, prepared["wih"], prepared["whh"], prepared["bih"], prepared["bhh"],
      prepared["wf"], prepared["bfc"])

    return pred_p[:B, :V], hnew_p[:B, :H][None, :, :]


def decoder_reference(params, token_ids, hidden, context, embedding_dim, hidden_dim,
                      quantize=False):
    """Pure-JAX reference mirroring the PyTorch forward (eval mode).

    quantize=True mimics the kernel's bf16 weight/activation quantization (with
    f32 accumulation), so the kernel can be checked with a tight tolerance."""
    E, H = embedding_dim, hidden_dim
    q = (lambda x: x.astype(jnp.bfloat16).astype(jnp.float32)) if quantize else (lambda x: x)
    dot = functools.partial(jnp.dot, precision=jax.lax.Precision.HIGHEST)

    embedded = jnp.take(params["embedding"], token_ids, axis=0)            # [B, E]
    h = hidden[0]
    ctx = context[0]
    x = jnp.concatenate([embedded, ctx], axis=1)                           # [B, E+H]
    gx = dot(q(x), q(params["w_ih"].T)) + params["b_ih"]
    gh = dot(q(h), q(params["w_hh"].T)) + params["b_hh"]
    r = jax.nn.sigmoid(gx[:, :H] + gh[:, :H])
    z = jax.nn.sigmoid(gx[:, H:2 * H] + gh[:, H:2 * H])
    n = jnp.tanh(gx[:, 2 * H:] + r * gh[:, 2 * H:])
    h_new = (1.0 - z) * n + z * h
    out = jnp.concatenate([embedded, h_new, ctx], axis=1)                  # [B, E+2H]
    pred = dot(q(out), q(params["w_fc"].T)) + params["b_fc"]
    return pred, h_new[None]


if __name__ == "__main__":
    OUTPUT_DIM = 1000     # vocab size
    EMBEDDING_DIM = 48
    HIDDEN_DIM = 96
    BATCH = 8

    # Vocab tile: for small vocabs collapse the grid to one step (fc weight is
    # VMEM-resident for the call); for large vocabs sweep 2048-8192.
    _vp128 = _round_up(OUTPUT_DIM, 128)
    TILE_V = _vp128 if _vp128 <= 4096 else 2048

    key = jax.random.PRNGKey(0)
    k_param, k_tok, k_hid, k_ctx = jax.random.split(key, 4)

    params = init_params(k_param, OUTPUT_DIM, EMBEDDING_DIM, HIDDEN_DIM)
    token_ids = jax.random.randint(k_tok, (BATCH,), 0, OUTPUT_DIM, dtype=jnp.int32)
    hidden = jax.random.normal(k_hid, (1, BATCH, HIDDEN_DIM), jnp.float32)
    context = jax.random.normal(k_ctx, (1, BATCH, HIDDEN_DIM), jnp.float32)

    prepared = prepare_weights(params, EMBEDDING_DIM, HIDDEN_DIM, OUTPUT_DIM, TILE_V)
    pred, h_new = decoder_forward(
        prepared, token_ids, hidden, context,
        embedding_dim=EMBEDDING_DIM, hidden_dim=HIDDEN_DIM,
        output_dim=OUTPUT_DIM, tile_v=TILE_V,
    )
    jax.block_until_ready((pred, h_new))

    # Tight check vs. a reference applying the same bf16 quantization (logic check).
    pred_q, h_q = decoder_reference(params, token_ids, hidden, context,
                                    EMBEDDING_DIM, HIDDEN_DIM, quantize=True)
    assert jnp.allclose(pred, pred_q, atol=5e-3), "prediction mismatch (quantized ref)"
    assert jnp.allclose(h_new, h_q, atol=5e-3), "hidden mismatch (quantized ref)"

    # Loose check vs. exact f32 PyTorch-equivalent math (bounded bf16 drift).
    pred_f, h_f = decoder_reference(params, token_ids, hidden, context,
                                    EMBEDDING_DIM, HIDDEN_DIM, quantize=False)
    assert jnp.allclose(pred, pred_f, atol=5e-2, rtol=5e-2), "prediction drift too large"
    assert jnp.allclose(h_new, h_f, atol=5e-2, rtol=5e-2), "hidden drift too large"

    print("KERNEL_OK")
</pallas_src>

<mosaic_0001>
module attributes {stable_mosaic.version = 11 : i64} {
  func.func @decoder_kernel(%arg0: i32, %arg1: memref<16x256xbf16, #tpu.memory_space<vmem>>, %arg2: memref<16x128xf32, #tpu.memory_space<vmem>>, %arg3: memref<256x384xbf16, #tpu.memory_space<vmem>>, %arg4: memref<128x384xbf16, #tpu.memory_space<vmem>>, %arg5: memref<1x384xf32, #tpu.memory_space<vmem>>, %arg6: memref<1x384xf32, #tpu.memory_space<vmem>>, %arg7: memref<384x1024xbf16, #tpu.memory_space<vmem>>, %arg8: memref<1x1024xf32, #tpu.memory_space<vmem>>, %arg9: memref<16x1024xf32, #tpu.memory_space<vmem>>, %arg10: memref<16x128xf32, #tpu.memory_space<vmem>>, %arg11: memref<16x384xbf16, #tpu.memory_space<vmem>>) attributes {dimension_semantics = [#tpu.dimension_semantics<arbitrary>], iteration_bounds = array<i64: 1>, scalar_prefetch = 0 : i64, scratch_operands = 1 : i64, tpu.core_type = #tpu.core_type<tc>, window_params = [{pipeline_mode = #tpu.pipeline_mode<synchronous>, transform_indices = @transform_0, window_bounds = array<i64: 16, 256>}, {pipeline_mode = #tpu.pipeline_mode<synchronous>, transform_indices = @transform_1, window_bounds = array<i64: 16, 128>}, {pipeline_mode = #tpu.pipeline_mode<synchronous>, transform_indices = @transform_2, window_bounds = array<i64: 256, 384>}, {pipeline_mode = #tpu.pipeline_mode<synchronous>, transform_indices = @transform_3, window_bounds = array<i64: 128, 384>}, {pipeline_mode = #tpu.pipeline_mode<synchronous>, transform_indices = @transform_4, window_bounds = array<i64: 1, 384>}, {pipeline_mode = #tpu.pipeline_mode<synchronous>, transform_indices = @transform_5, window_bounds = array<i64: 1, 384>}, {transform_indices = @transform_6, window_bounds = array<i64: 384, 1024>}, {transform_indices = @transform_7, window_bounds = array<i64: 1, 1024>}, {transform_indices = @transform_8, window_bounds = array<i64: 16, 1024>}, {pipeline_mode = #tpu.pipeline_mode<synchronous>, transform_indices = @transform_9, window_bounds = array<i64: 16, 128>}]} {
    %c0_i32 = arith.constant 0 : i32
    %0 = arith.cmpi eq, %arg0, %c0_i32 : i32
    %1 = arith.extui %0 : i1 to i32
    %c0_i32_0 = arith.constant 0 : i32
    %2 = arith.cmpi ne, %1, %c0_i32_0 : i32
    scf.if %2 {
      %c0_8 = arith.constant 0 : index
      %c0_9 = arith.constant 0 : index
      %10 = vector.load %arg1[%c0_8, %c0_9] : memref<16x256xbf16, #tpu.memory_space<vmem>>, vector<16x256xbf16>
      %c0_10 = arith.constant 0 : index
      %c0_11 = arith.constant 0 : index
      %11 = vector.load %arg2[%c0_10, %c0_11] : memref<16x128xf32, #tpu.memory_space<vmem>>, vector<16x128xf32>
      %c0_12 = arith.constant 0 : index
      %c0_13 = arith.constant 0 : index
      %12 = vector.load %arg3[%c0_12, %c0_13] : memref<256x384xbf16, #tpu.memory_space<vmem>>, vector<256x384xbf16>
      %cst_14 = arith.constant dense<0.000000e+00> : vector<16x384xf32>
      %13 = tpu.matmul %10, %12, %cst_14 {dimension_numbers = #tpu.dot_dimension_numbers<[1], [0], [0], [1], [0, 0, 1, 1], [], []>} : vector<16x256xbf16>, vector<256x384xbf16>, vector<16x384xf32> -> vector<16x384xf32>
      %c0_15 = arith.constant 0 : index
      %c0_16 = arith.constant 0 : index
      %14 = vector.load %arg5[%c0_15, %c0_16] : memref<1x384xf32, #tpu.memory_space<vmem>>, vector<1x384xf32>
      %15 = vector.broadcast %14 : vector<1x384xf32> to vector<16x384xf32>
      %16 = arith.addf %13, %15 : vector<16x384xf32>
      %17 = arith.truncf %11 : vector<16x128xf32> to vector<16x128xbf16>
      %c0_17 = arith.constant 0 : index
      %c0_18 = arith.constant 0 : index
      %18 = vector.load %arg4[%c0_17, %c0_18] : memref<128x384xbf16, #tpu.memory_space<vmem>>, vector<128x384xbf16>
      %cst_19 = arith.constant dense<0.000000e+00> : vector<16x384xf32>
      %19 = tpu.matmul %17, %18, %cst_19 {dimension_numbers = #tpu.dot_dimension_numbers<[1], [0], [0], [1], [0, 0, 1, 1], [], []>} : vector<16x128xbf16>, vector<128x384xbf16>, vector<16x384xf32> -> vector<16x384xf32>
      %c0_20 = arith.constant 0 : index
      %c0_21 = arith.constant 0 : index
      %20 = vector.load %arg6[%c0_20, %c0_21] : memref<1x384xf32, #tpu.memory_space<vmem>>, vector<1x384xf32>
      %21 = vector.broadcast %20 : vector<1x384xf32> to vector<16x384xf32>
      %22 = arith.addf %19, %21 : vector<16x384xf32>
      %23 = vector.extract_strided_slice %16 {offsets = [0, 0], sizes = [16, 128], strides = [1, 1]} : vector<16x384xf32> to vector<16x128xf32>
      %24 = vector.extract_strided_slice %22 {offsets = [0, 0], sizes = [16, 128], strides = [1, 1]} : vector<16x384xf32> to vector<16x128xf32>
      %25 = arith.addf %23, %24 : vector<16x128xf32>
      %26 = arith.negf %25 : vector<16x128xf32>
      %27 = math.exp %26 : vector<16x128xf32>
      %cst_22 = arith.constant 1.000000e+00 : f32
      %28 = vector.broadcast %cst_22 : f32 to vector<16x128xf32>
      %29 = arith.addf %28, %27 : vector<16x128xf32>
      %30 = arith.divf %28, %29 : vector<16x128xf32>
      %31 = vector.extract_strided_slice %16 {offsets = [0, 128], sizes = [16, 128], strides = [1, 1]} : vector<16x384xf32> to vector<16x128xf32>
      %32 = vector.extract_strided_slice %22 {offsets = [0, 128], sizes = [16, 128], strides = [1, 1]} : vector<16x384xf32> to vector<16x128xf32>
      %33 = arith.addf %31, %32 : vector<16x128xf32>
      %34 = arith.negf %33 : vector<16x128xf32>
      %35 = math.exp %34 : vector<16x128xf32>
      %cst_23 = arith.constant 1.000000e+00 : f32
      %36 = vector.broadcast %cst_23 : f32 to vector<16x128xf32>
      %37 = arith.addf %36, %35 : vector<16x128xf32>
      %38 = arith.divf %36, %37 : vector<16x128xf32>
      %39 = vector.extract_strided_slice %16 {offsets = [0, 256], sizes = [16, 128], strides = [1, 1]} : vector<16x384xf32> to vector<16x128xf32>
      %40 = vector.extract_strided_slice %22 {offsets = [0, 256], sizes = [16, 128], strides = [1, 1]} : vector<16x384xf32> to vector<16x128xf32>
      %41 = arith.mulf %30, %40 : vector<16x128xf32>
      %42 = arith.addf %39, %41 : vector<16x128xf32>
      %43 = math.tanh %42 : vector<16x128xf32>
      %cst_24 = arith.constant 1.000000e+00 : f32
      %44 = vector.broadcast %cst_24 : f32 to vector<16x128xf32>
      %45 = arith.subf %44, %38 : vector<16x128xf32>
      %46 = arith.mulf %45, %43 : vector<16x128xf32>
      %47 = arith.mulf %38, %11 : vector<16x128xf32>
      %48 = arith.addf %46, %47 : vector<16x128xf32>
      %c0_25 = arith.constant 0 : index
      %c0_26 = arith.constant 0 : index
      %49 = vector.load %arg10[%c0_25, %c0_26] : memref<16x128xf32, #tpu.memory_space<vmem>>, vector<16x128xf32>
      tpu.vector_store %arg10[%c0_25, %c0_26], %48 {strides = array<i32>} : memref<16x128xf32, #tpu.memory_space<vmem>>, vector<16x128xf32>,
      %c0_27 = arith.constant 0 : index
      %c0_28 = arith.constant 0 : index
      %50 = vector.load %arg11[%c0_27, %c0_28] : memref<16x384xbf16, #tpu.memory_space<vmem>>, vector<16x256xbf16>
      tpu.vector_store %arg11[%c0_27, %c0_28], %10 {strides = array<i32>} : memref<16x384xbf16, #tpu.memory_space<vmem>>, vector<16x256xbf16>,
      %51 = arith.truncf %48 : vector<16x128xf32> to vector<16x128xbf16>
      %c0_29 = arith.constant 0 : index
      %c256 = arith.constant 256 : index
      %52 = vector.load %arg11[%c0_29, %c256] : memref<16x384xbf16, #tpu.memory_space<vmem>>, vector<16x128xbf16>
      tpu.vector_store %arg11[%c0_29, %c256], %51 {strides = array<i32>} : memref<16x384xbf16, #tpu.memory_space<vmem>>, vector<16x128xbf16>,
    } else {
    }
    %c0 = arith.constant 0 : index
    %c0_1 = arith.constant 0 : index
    %3 = vector.load %arg11[%c0, %c0_1] : memref<16x384xbf16, #tpu.memory_space<vmem>>, vector<16x384xbf16>
    %c0_2 = arith.constant 0 : index
    %c0_3 = arith.constant 0 : index
    %4 = vector.load %arg7[%c0_2, %c0_3] : memref<384x1024xbf16, #tpu.memory_space<vmem>>, vector<384x1024xbf16>
    %cst = arith.constant dense<0.000000e+00> : vector<16x1024xf32>
    %5 = tpu.matmul %3, %4, %cst {dimension_numbers = #tpu.dot_dimension_numbers<[1], [0], [0], [1], [0, 0, 1, 1], [], []>} : vector<16x384xbf16>, vector<384x1024xbf16>, vector<16x1024xf32> -> vector<16x1024xf32>
    %c0_4 = arith.constant 0 : index
    %c0_5 = arith.constant 0 : index
    %6 = vector.load %arg8[%c0_4, %c0_5] : memref<1x1024xf32, #tpu.memory_space<vmem>>, vector<1x1024xf32>
    %7 = vector.broadcast %6 : vector<1x1024xf32> to vector<16x1024xf32>
    %8 = arith.addf %5, %7 : vector<16x1024xf32>
    %c0_6 = arith.constant 0 : index
    %c0_7 = arith.constant 0 : index
    %9 = vector.load %arg9[%c0_6, %c0_7] : memref<16x1024xf32, #tpu.memory_space<vmem>>, vector<16x1024xf32>
    tpu.vector_store %arg9[%c0_6, %c0_7], %8 {strides = array<i32>} : memref<16x1024xf32, #tpu.memory_space<vmem>>, vector<16x1024xf32>,
    return
  }
  func.func @transform_0(%arg0: i32) -> (i32, i32) {
    %c0_i32 = arith.constant 0 : i32
    %c0_i32_0 = arith.constant 0 : i32
    %c0_i32_1 = arith.constant 0 : i32
    return %c0_i32, %c0_i32_0 : i32, i32
  }
  func.func @transform_1(%arg0: i32) -> (i32, i32) {
    %c0_i32 = arith.constant 0 : i32
    %c0_i32_0 = arith.constant 0 : i32
    %c0_i32_1 = arith.constant 0 : i32
    return %c0_i32, %c0_i32_0 : i32, i32
  }
  func.func @transform_2(%arg0: i32) -> (i32, i32) {
    %c0_i32 = arith.constant 0 : i32
    %c0_i32_0 = arith.constant 0 : i32
    %c0_i32_1 = arith.constant 0 : i32
    return %c0_i32, %c0_i32_0 : i32, i32
  }
  func.func @transform_3(%arg0: i32) -> (i32, i32) {
    %c0_i32 = arith.constant 0 : i32
    %c0_i32_0 = arith.constant 0 : i32
    %c0_i32_1 = arith.constant 0 : i32
    return %c0_i32, %c0_i32_0 : i32, i32
  }
  func.func @transform_4(%arg0: i32) -> (i32, i32) {
    %c0_i32 = arith.constant 0 : i32
    %c0_i32_0 = arith.constant 0 : i32
    %c0_i32_1 = arith.constant 0 : i32
    return %c0_i32, %c0_i32_0 : i32, i32
  }
  func.func @transform_5(%arg0: i32) -> (i32, i32) {
    %c0_i32 = arith.constant 0 : i32
    %c0_i32_0 = arith.constant 0 : i32
    %c0_i32_1 = arith.constant 0 : i32
    return %c0_i32, %c0_i32_0 : i32, i32
  }
  func.func @transform_6(%arg0: i32) -> (i32, i32) {
    %c0_i32 = arith.constant 0 : i32
    %c0_i32_0 = arith.constant 0 : i32
    return %c0_i32, %arg0 : i32, i32
  }
  func.func @transform_7(%arg0: i32) -> (i32, i32) {
    %c0_i32 = arith.constant 0 : i32
    %c0_i32_0 = arith.constant 0 : i32
    return %c0_i32, %arg0 : i32, i32
  }
  func.func @transform_8(%arg0: i32) -> (i32, i32) {
    %c0_i32 = arith.constant 0 : i32
    %c0_i32_0 = arith.constant 0 : i32
    return %c0_i32, %arg0 : i32, i32
  }
  func.func @transform_9(%arg0: i32) -> (i32, i32) {
    %c0_i32 = arith.constant 0 : i32
    %c0_i32_0 = arith.constant 0 : i32
    %c0_i32_1 = arith.constant 0 : i32
    return %c0_i32, %c0_i32_0 : i32, i32
  }
}

</mosaic_0001>

<llo_original>
// kernel: decoder_forward.1
$region0: #{decoder_forward.1}
  #allocation0 [shape = 'u32[]', space=smem, size = 0x4, offset = 0x4, fixed_abs, tag = 'smem constant byte address 0x4 - core index']
  #allocation1 [shape = 'u32[144,128]{1,0:T(1,128)}', space=vmem, size = 0x12000, scoped, tag = 'internal scratch']
  #allocation2 [shape = 'bf16[16,384]{1,0:T(16,128)(2,1)}', space=vmem, size = 0x3000, scoped, tag = 'scratch operand']
  %s0 = inlined_call_operand.vmem [shape: bf16[16,256], index: 0, kind: input, shape index: {}]
  %s1 = inlined_call_operand.vmem [shape: f32[16,128], index: 1, kind: input, shape index: {}]
  %s2 = inlined_call_operand.vmem [shape: bf16[256,384], index: 2, kind: input, shape index: {}]
  %s3 = inlined_call_operand.vmem [shape: bf16[128,384], index: 3, kind: input, shape index: {}]
  %s4 = inlined_call_operand.vmem [shape: f32[1,384], index: 4, kind: input, shape index: {}]
  %s5 = inlined_call_operand.vmem [shape: f32[1,384], index: 5, kind: input, shape index: {}]
  %s6 = inlined_call_operand.hbm [shape: bf16[384,1024], index: 6, kind: input, shape index: {}]
  %s7 = inlined_call_operand.vmem [shape: f32[1,1024], index: 7, kind: input, shape index: {}]
  %s8 = inlined_call_operand.vmem [shape: f32[16,1024], index: 8, kind: output, shape index: {0}]
  %s9 = inlined_call_operand.vmem [shape: f32[16,128], index: 9, kind: output, shape index: {1}]
  %10 = xla_tuple %s8, %s9
  %s11 = sld [smem:[#allocation0]]
  $region58: #{decoder_forward.1} parent=0
    _
  %s13 = ssub.s32 1, %s11
  %s14 = scalar_select 0, %s13, %s11
  $region1: #{decoder_forward.1} parent=0
    #allocation3 [shape = 'u8[786432]{0}', space=vmem, size = 0xc0000, scoped, tag = 'input window, operand 6, single buffered']
    #allocation4 [shape = 's32[1]{0}', space=sflag, size = 0x4, scoped, tag = 'scoped memory for decoder_forward.1']
    %15 = vsyncpa [#allocation4], 0
    // Predicated region
    $region2: #{decoder_forward.1} parent=1 // pred_check
      _
    $region3: #{decoder_forward.1} parent=1 // pred_check_branch
      %17 = sbr.rel (0) target = $region5
    $region4: #{decoder_forward.1} parent=1 // pred_region
      _
    $region5: #{decoder_forward.1} parent=1 // pred_fallthru
      _
    // Predicated region
    $region6: #{decoder_forward.1} parent=1 // pred_check
      _
    $region7: #{decoder_forward.1} parent=1 // pred_check_branch
      %19 = sbr.rel (0) target = $region9
    $region8: #{decoder_forward.1} parent=1 // pred_region
      _
    $region9: #{decoder_forward.1} parent=1 // pred_fallthru
      _
    // Predicated region
    $region10: #{decoder_forward.1} parent=1 // pred_check
      _
    $region11: #{decoder_forward.1} parent=1 // pred_check_branch
      %21 = sbr.rel (0) target = $region13
    $region12: #{decoder_forward.1} parent=1 // pred_region
      _
    $region13: #{decoder_forward.1} parent=1 // pred_fallthru
      _
    // Predicated region
    $region14: #{decoder_forward.1} parent=1 // pred_check
      _
    $region15: #{decoder_forward.1} parent=1 // pred_check_branch
      %23 = sbr.rel (0) target = $region17
    $region16: #{decoder_forward.1} parent=1 // pred_region
      _
    $region17: #{decoder_forward.1} parent=1 // pred_fallthru
      _
    // Predicated region
    $region18: #{decoder_forward.1} parent=1 // pred_check
      _
    $region19: #{decoder_forward.1} parent=1 // pred_check_branch
      %25 = sbr.rel (0) target = $region21
    $region20: #{decoder_forward.1} parent=1 // pred_region
      _
    $region21: #{decoder_forward.1} parent=1 // pred_fallthru
      _
    // Predicated region
    $region22: #{decoder_forward.1} parent=1 // pred_check
      _
    $region23: #{decoder_forward.1} parent=1 // pred_check_branch
      %27 = sbr.rel (0) target = $region25
    $region24: #{decoder_forward.1} parent=1 // pred_region
      _
    $region25: #{decoder_forward.1} parent=1 // pred_fallthru
      _
    // Predicated region
    $region26: #{decoder_forward.1} parent=1 // pred_check
      _
    $region27: #{decoder_forward.1} parent=1 // pred_check_branch
      %29 = sbr.rel (0) target = $region29
    $region28: #{decoder_forward.1} parent=1 // pred_region
      %s31 = ssub.s32 24576, 24576
      %32 = vsyncadd [#allocation4], %s31
      %s33 = sshll.u32 [#allocation3], 4
      %s34 = int_to_ptr.vmem [resolvable:$true] %s33
      %39 = dma.hbm_to_vmem [thread:$0]  %s6, 24576, %s34, [#allocation4], 512, 512, 32
    $region29: #{decoder_forward.1} parent=1 // pred_fallthru
      _
    // Predicated region
    $region30: #{decoder_forward.1} parent=1 // pred_check
      _
    $region31: #{decoder_forward.1} parent=1 // pred_check_branch
      %41 = sbr.rel (0) target = $region33
    $region32: #{decoder_forward.1} parent=1 // pred_region
      _
    $region33: #{decoder_forward.1} parent=1 // pred_fallthru
      _
    // Predicated region
    $region34: #{decoder_forward.1} parent=1 // pred_check
      _
    $region35: #{decoder_forward.1} parent=1 // pred_check_branch
      %43 = sbr.rel (0) target = $region37
    $region36: #{decoder_forward.1} parent=1 // pred_region
      %44 = dma.done [#allocation4], 24576
    $region37: #{decoder_forward.1} parent=1 // pred_fallthru
      _
    %p46 = scmp.eq.s32.totalorder 0, 0
    // Predicated region
    $region38: #{decoder_forward.1} parent=1 // pred_check
      %p47 = pneg %p46
    $region39: #{decoder_forward.1} parent=1 // pred_check_branch
      %49 = sbr.rel (%p47) target = $region41
    $region40: #{decoder_forward.1} parent=1 // pred_region
      %v50 = vld [vmem:[%s0] sm:$0xff]
      %v51 = vld [vmem:[%s0 + $0x8] sm:$0xff]
      %v52 = vld [vmem:[%s1] sm:$0xff]
      %v53 = vld [vmem:[%s1 + $0x8] sm:$0xff]
      %v54 = vld [vmem:[%s2] sm:$0xff]
      %v55 = vld [vmem:[%s2 + $0x8] sm:$0xf]
      %v56 = vld [vmem:[%s2 + $0xc] sm:$0xff]
      %v57 = vld [vmem:[%s2 + $0x14] sm:$0xf]
      %v58 = vld [vmem:[%s2 + $0x18] sm:$0xff]
      %v59 = vld [vmem:[%s2 + $0x20] sm:$0xf]
      %v60 = vld [vmem:[%s2 + $0x24] sm:$0xff]
      %v61 = vld [vmem:[%s2 + $0x2c] sm:$0xf]
      %v62 = vld [vmem:[%s2 + $0x30] sm:$0xff]
      %v63 = vld [vmem:[%s2 + $0x38] sm:$0xf]
      %v64 = vld [vmem:[%s2 + $0x3c] sm:$0xff]
      %v65 = vld [vmem:[%s2 + $0x44] sm:$0xf]
      %v66 = vld [vmem:[%s2 + $0x48] sm:$0xff]
      %v67 = vld [vmem:[%s2 + $0x50] sm:$0xf]
      %v68 = vld [vmem:[%s2 + $0x54] sm:$0xff]
      %v69 = vld [vmem:[%s2 + $0x5c] sm:$0xf]
      %v70 = vld [vmem:[%s2 + $0x60] sm:$0xff]
      %v71 = vld [vmem:[%s2 + $0x68] sm:$0xf]
      %v72 = vld [vmem:[%s2 + $0x6c] sm:$0xff]
      %v73 = vld [vmem:[%s2 + $0x74] sm:$0xf]
      %v74 = vld [vmem:[%s2 + $0x78] sm:$0xff]
      %v75 = vld [vmem:[%s2 + $0x80] sm:$0xf]
      %v76 = vld [vmem:[%s2 + $0x84] sm:$0xff]
      %v77 = vld [vmem:[%s2 + $0x8c] sm:$0xf]
      %v78 = vld [vmem:[%s2 + $0x90] sm:$0xff]
      %v79 = vld [vmem:[%s2 + $0x98] sm:$0xf]
      %v80 = vld [vmem:[%s2 + $0x9c] sm:$0xff]
      %v81 = vld [vmem:[%s2 + $0xa4] sm:$0xf]
      %v82 = vld [vmem:[%s2 + $0xa8] sm:$0xff]
      %v83 = vld [vmem:[%s2 + $0xb0] sm:$0xf]
      %v84 = vld [vmem:[%s2 + $0xb4] sm:$0xff]
      %v85 = vld [vmem:[%s2 + $0xbc] sm:$0xf]
      %v86 = vld [vmem:[%s2 + $0xc0] sm:$0xff]
      %v87 = vld [vmem:[%s2 + $0xc8] sm:$0xf]
      %v88 = vld [vmem:[%s2 + $0xcc] sm:$0xff]
      %v89 = vld [vmem:[%s2 + $0xd4] sm:$0xf]
      %v90 = vld [vmem:[%s2 + $0xd8] sm:$0xff]
      %v91 = vld [vmem:[%s2 + $0xe0] sm:$0xf]
      %v92 = vld [vmem:[%s2 + $0xe4] sm:$0xff]
      %v93 = vld [vmem:[%s2 + $0xec] sm:$0xf]
      %v94 = vld [vmem:[%s2 + $0xf0] sm:$0xff]
      %v95 = vld [vmem:[%s2 + $0xf8] sm:$0xf]
      %v96 = vld [vmem:[%s2 + $0xfc] sm:$0xff]
      %v97 = vld [vmem:[%s2 + $0x104] sm:$0xf]
      %v98 = vld [vmem:[%s2 + $0x108] sm:$0xff]
      %v99 = vld [vmem:[%s2 + $0x110] sm:$0xf]
      %v100 = vld [vmem:[%s2 + $0x114] sm:$0xff]
      %v101 = vld [vmem:[%s2 + $0x11c] sm:$0xf]
      %v102 = vld [vmem:[%s2 + $0x120] sm:$0xff]
      %v103 = vld [vmem:[%s2 + $0x128] sm:$0xf]
      %v104 = vld [vmem:[%s2 + $0x12c] sm:$0xff]
      %v105 = vld [vmem:[%s2 + $0x134] sm:$0xf]
      %v106 = vld [vmem:[%s2 + $0x138] sm:$0xff]
      %v107 = vld [vmem:[%s2 + $0x140] sm:$0xf]
      %v108 = vld [vmem:[%s2 + $0x144] sm:$0xff]
      %v109 = vld [vmem:[%s2 + $0x14c] sm:$0xf]
      %v110 = vld [vmem:[%s2 + $0x150] sm:$0xff]
      %v111 = vld [vmem:[%s2 + $0x158] sm:$0xf]
      %v112 = vld [vmem:[%s2 + $0x15c] sm:$0xff]
      %v113 = vld [vmem:[%s2 + $0x164] sm:$0xf]
      %v114 = vld [vmem:[%s2 + $0x168] sm:$0xff]
      %v115 = vld [vmem:[%s2 + $0x170] sm:$0xf]
      %v116 = vld [vmem:[%s2 + $0x174] sm:$0xff]
      %v117 = vld [vmem:[%s2 + $0x17c] sm:$0xf]
      %v118 = vld [vmem:[%s4] sm:$0x7]
      %v120 = vlaneseq
      %v121 = vshrl.u32 %v120, 7
      %v122 = vsub.s32 0, %v121
      %v123 = vrot.slane %v118, %v122
      %v124 = vlaneseq
      %v125 = vshrl.u32 %v124, 7
      %v126 = vsub.s32 1, %v125
      %v127 = vrot.slane %v118, %v126
      %v128 = vlaneseq
      %v129 = vshrl.u32 %v128, 7
      %v130 = vsub.s32 2, %v129
      %v131 = vrot.slane %v118, %v130
      %v137 = vunpack.c.l.b16 %v50
      %v138 = vunpack.c.h.b16 %v50
      %v139 = vunpack.c.l.b16 %v51
      %v140 = vunpack.c.h.b16 %v51
      %v141 = vpack.c.b16 %v139, %v137
      %v142 = vpack.c.b16 %v140, %v138
      %v209 = vunpack.c.l.b16 %v54
      %v210 = vunpack.c.h.b16 %v54
      %v211 = vunpack.c.l.b16 %v55
      %v212 = vunpack.c.l.b16 %v56
      %v213 = vunpack.c.h.b16 %v56
      %v214 = vunpack.c.l.b16 %v57
      %v215 = vunpack.c.l.b16 %v58
      %v216 = vunpack.c.h.b16 %v58
      %v217 = vunpack.c.l.b16 %v59
      %v218 = vunpack.c.l.b16 %v60
      %v219 = vunpack.c.h.b16 %v60
      %v220 = vunpack.c.l.b16 %v61
      %v221 = vunpack.c.l.b16 %v62
      %v222 = vunpack.c.h.b16 %v62
      %v223 = vunpack.c.l.b16 %v63
      %v224 = vunpack.c.l.b16 %v64
      %v225 = vunpack.c.h.b16 %v64
      %v226 = vunpack.c.l.b16 %v65
      %v227 = vunpack.c.l.b16 %v66
      %v228 = vunpack.c.h.b16 %v66
      %v229 = vunpack.c.l.b16 %v67
      %v230 = vunpack.c.l.b16 %v68
      %v231 = vunpack.c.h.b16 %v68
      %v232 = vunpack.c.l.b16 %v69
      %v233 = vunpack.c.l.b16 %v70
      %v234 = vunpack.c.h.b16 %v70
      %v235 = vunpack.c.l.b16 %v71
      %v236 = vunpack.c.l.b16 %v72
      %v237 = vunpack.c.h.b16 %v72
      %v238 = vunpack.c.l.b16 %v73
      %v239 = vunpack.c.l.b16 %v74
      %v240 = vunpack.c.h.b16 %v74
      %v241 = vunpack.c.l.b16 %v75
      %v242 = vunpack.c.l.b16 %v76
      %v243 = vunpack.c.h.b16 %v76
      %v244 = vunpack.c.l.b16 %v77
      %v245 = vunpack.c.l.b16 %v78
      %v246 = vunpack.c.h.b16 %v78
      %v247 = vunpack.c.l.b16 %v79
      %v248 = vunpack.c.l.b16 %v80
      %v249 = vunpack.c.h.b16 %v80
      %v250 = vunpack.c.l.b16 %v81
      %v251 = vunpack.c.l.b16 %v82
      %v252 = vunpack.c.h.b16 %v82
      %v253 = vunpack.c.l.b16 %v83
      %v254 = vunpack.c.l.b16 %v84
      %v255 = vunpack.c.h.b16 %v84
      %v256 = vunpack.c.l.b16 %v85
      %v257 = vunpack.c.l.b16 %v86
      %v258 = vunpack.c.h.b16 %v86
      %v259 = vunpack.c.l.b16 %v87
      %v260 = vunpack.c.l.b16 %v88
      %v261 = vunpack.c.h.b16 %v88
      %v262 = vunpack.c.l.b16 %v89
      %v263 = vunpack.c.l.b16 %v90
      %v264 = vunpack.c.h.b16 %v90
      %v265 = vunpack.c.l.b16 %v91
      %v266 = vunpack.c.l.b16 %v92
      %v267 = vunpack.c.h.b16 %v92
      %v268 = vunpack.c.l.b16 %v93
      %v269 = vunpack.c.l.b16 %v94
      %v270 = vunpack.c.h.b16 %v94
      %v271 = vunpack.c.l.b16 %v95
      %v272 = vunpack.c.l.b16 %v96
      %v273 = vunpack.c.h.b16 %v96
      %v274 = vunpack.c.l.b16 %v97
      %v275 = vunpack.c.l.b16 %v98
      %v276 = vunpack.c.h.b16 %v98
      %v277 = vunpack.c.l.b16 %v99
      %v278 = vunpack.c.l.b16 %v100
      %v279 = vunpack.c.h.b16 %v100
      %v280 = vunpack.c.l.b16 %v101
      %v281 = vunpack.c.l.b16 %v102
      %v282 = vunpack.c.h.b16 %v102
      %v283 = vunpack.c.l.b16 %v103
      %v284 = vunpack.c.l.b16 %v104
      %v285 = vunpack.c.h.b16 %v104
      %v286 = vunpack.c.l.b16 %v105
      %v287 = vunpack.c.l.b16 %v106
      %v288 = vunpack.c.h.b16 %v106
      %v289 = vunpack.c.l.b16 %v107
      %v290 = vunpack.c.l.b16 %v108
      %v291 = vunpack.c.h.b16 %v108
      %v292 = vunpack.c.l.b16 %v109
      %v293 = vunpack.c.l.b16 %v110
      %v294 = vunpack.c.h.b16 %v110
      %v295 = vunpack.c.l.b16 %v111
      %v296 = vunpack.c.l.b16 %v112
      %v297 = vunpack.c.h.b16 %v112
      %v298 = vunpack.c.l.b16 %v113
      %v299 = vunpack.c.l.b16 %v114
      %v300 = vunpack.c.h.b16 %v114
      %v301 = vunpack.c.l.b16 %v115
      %v302 = vunpack.c.l.b16 %v116
      %v303 = vunpack.c.h.b16 %v116
      %v304 = vunpack.c.l.b16 %v117
      %v305 = vpack.c.b16 %v212, %v209
      %v306 = vpack.c.b16 %v213, %v210
      %v307 = vpack.c.b16 %v214, %v211
      %v308 = vpack.c.b16 %v218, %v215
      %v309 = vpack.c.b16 %v219, %v216
      %v310 = vpack.c.b16 %v220, %v217
      %v311 = vpack.c.b16 %v224, %v221
      %v312 = vpack.c.b16 %v225, %v222
      %v313 = vpack.c.b16 %v226, %v223
      %v314 = vpack.c.b16 %v230, %v227
      %v315 = vpack.c.b16 %v231, %v228
      %v316 = vpack.c.b16 %v232, %v229
      %v317 = vpack.c.b16 %v236, %v233
      %v318 = vpack.c.b16 %v237, %v234
      %v319 = vpack.c.b16 %v238, %v235
      %v320 = vpack.c.b16 %v242, %v239
      %v321 = vpack.c.b16 %v243, %v240
      %v322 = vpack.c.b16 %v244, %v241
      %v323 = vpack.c.b16 %v248, %v245
      %v324 = vpack.c.b16 %v249, %v246
      %v325 = vpack.c.b16 %v250, %v247
      %v326 = vpack.c.b16 %v254, %v251
      %v327 = vpack.c.b16 %v255, %v252
      %v328 = vpack.c.b16 %v256, %v253
      %v329 = vpack.c.b16 %v260, %v257
      %v330 = vpack.c.b16 %v261, %v258
      %v331 = vpack.c.b16 %v262, %v259
      %v332 = vpack.c.b16 %v266, %v263
      %v333 = vpack.c.b16 %v267, %v264
      %v334 = vpack.c.b16 %v268, %v265
      %v335 = vpack.c.b16 %v272, %v269
      %v336 = vpack.c.b16 %v273, %v270
      %v337 = vpack.c.b16 %v274, %v271
      %v338 = vpack.c.b16 %v278, %v275
      %v339 = vpack.c.b16 %v279, %v276
      %v340 = vpack.c.b16 %v280, %v277
      %v341 = vpack.c.b16 %v284, %v281
      %v342 = vpack.c.b16 %v285, %v282
      %v343 = vpack.c.b16 %v286, %v283
      %v344 = vpack.c.b16 %v290, %v287
      %v345 = vpack.c.b16 %v291, %v288
      %v346 = vpack.c.b16 %v292, %v289
      %v347 = vpack.c.b16 %v296, %v293
      %v348 = vpack.c.b16 %v297, %v294
      %v349 = vpack.c.b16 %v298, %v295
      %v350 = vpack.c.b16 %v302, %v299
      %v351 = vpack.c.b16 %v303, %v300
      %v352 = vpack.c.b16 %v304, %v301
      %401 = vmatprep.subr.bf16.mxu0 %v306
      %402 = vmatpush1.bf16.msra.mxu0 %v305
      %403 = vmatprep.subr.bf16.mxu0 %v309
      %404 = vmatpush1.bf16.msra.mxu0 %v308
      %405 = vmatprep.subr.bf16.mxu0 %v312
      %406 = vmatpush1.bf16.msra.mxu0 %v311
      %407 = vmatprep.subr.bf16.mxu0 %v315
      %408 = vmatpush1.bf16.msra.mxu0 %v314
      %409 = vmatprep.subr.bf16.mxu0 %v318
      %410 = vmatpush1.bf16.msra.mxu0 %v317
      %411 = vmatprep.subr.bf16.mxu0 %v321
      %412 = vmatpush1.bf16.msra.mxu0 %v320
      %413 = vmatprep.subr.bf16.mxu0 %v324
      %414 = vmatpush1.bf16.msra.mxu0 %v323
      %415 = vmatprep.subr.bf16.mxu0 %v327
      %416 = vmatpush1.bf16.msra.mxu0 %v326
      %417 = vmatprep.subr.bf16.mxu0 %v330
      %418 = vmatpush1.bf16.msra.mxu0 %v329
      %419 = vmatprep.subr.bf16.mxu0 %v333
      %420 = vmatpush1.bf16.msra.mxu0 %v332
      %421 = vmatprep.subr.bf16.mxu0 %v336
      %422 = vmatpush1.bf16.msra.mxu0 %v335
      %423 = vmatprep.subr.bf16.mxu0 %v339
      %424 = vmatpush1.bf16.msra.mxu0 %v338
      %425 = vmatprep.subr.bf16.mxu0 %v342
      %426 = vmatpush1.bf16.msra.mxu0 %v341
      %427 = vmatprep.subr.bf16.mxu0 %v345
      %428 = vmatpush1.bf16.msra.mxu0 %v344
      %429 = vmatprep.subr.bf16.mxu0 %v348
      %430 = vmatpush1.bf16.msra.mxu0 %v347
      %431 = vmatprep.subr.bf16.mxu0 %v351
      %432 = vmatpush1.bf16.msra.mxu0 %v350
      %433 = vmatprep.mubr.bf16.mxu0 %v142
      %434 = vmatmul.mubr.bf16.gmra.mrb[0].mxu0 %v141
      %v435 = vpop.f32.mrb[0].mxu0
      %v436 = vadd.f32 %v123, %v435
      %v437 = vpop.f32.mrb[0].mxu0
      %v438 = vadd.f32 %v127, %v437
      %v439 = vpop.f32.mrb[0].mxu0
      %v440 = vadd.f32 %v123, %v439
      %v441 = vpop.f32.mrb[0].mxu0
      %v442 = vadd.f32 %v127, %v441
      %443 = vdwg.mxu0
      %444 = vmatprep.subr.bf16.mxu0 0
      %445 = vmatpush1.bf16.msra.mxu0 %v307
      %446 = vmatprep.subr.bf16.mxu0 0
      %447 = vmatpush1.bf16.msra.mxu0 %v310
      %448 = vmatprep.subr.bf16.mxu0 0
      %449 = vmatpush1.bf16.msra.mxu0 %v313
      %450 = vmatprep.subr.bf16.mxu0 0
      %451 = vmatpush1.bf16.msra.mxu0 %v316
      %452 = vmatprep.subr.bf16.mxu0 0
      %453 = vmatpush1.bf16.msra.mxu0 %v319
      %454 = vmatprep.subr.bf16.mxu0 0
      %455 = vmatpush1.bf16.msra.mxu0 %v322
      %456 = vmatprep.subr.bf16.mxu0 0
      %457 = vmatpush1.bf16.msra.mxu0 %v325
      %458 = vmatprep.subr.bf16.mxu0 0
      %459 = vmatpush1.bf16.msra.mxu0 %v328
      %460 = vmatprep.subr.bf16.mxu0 0
      %461 = vmatpush1.bf16.msra.mxu0 %v331
      %462 = vmatprep.subr.bf16.mxu0 0
      %463 = vmatpush1.bf16.msra.mxu0 %v334
      %464 = vmatprep.subr.bf16.mxu0 0
      %465 = vmatpush1.bf16.msra.mxu0 %v337
      %466 = vmatprep.subr.bf16.mxu0 0
      %467 = vmatpush1.bf16.msra.mxu0 %v340
      %468 = vmatprep.subr.bf16.mxu0 0
      %469 = vmatpush1.bf16.msra.mxu0 %v343
      %470 = vmatprep.subr.bf16.mxu0 0
      %471 = vmatpush1.bf16.msra.mxu0 %v346
      %472 = vmatprep.subr.bf16.mxu0 0
      %473 = vmatpush1.bf16.msra.mxu0 %v349
      %474 = vmatprep.subr.bf16.mxu0 0
      %475 = vmatpush1.bf16.msra.mxu0 %v352
      %476 = vmatprep.mubr.bf16.mxu0 %v142
      %477 = vmatmul.mubr.bf16.gmra.mrb[0].mxu0 %v141
      %v478 = vpop.f32.mrb[0].mxu0
      %v479 = vadd.f32 %v131, %v478
      %v480 = vpop.f32.mrb[0].mxu0
      %v481 = vpop.f32.mrb[0].mxu0
      %v482 = vadd.f32 %v131, %v481
      %v483 = vpop.f32.mrb[0].mxu0
      %484 = vdwg.mxu0
      %v485 = vpack.c.bf16 %v53, %v52
      %v486 = vld [vmem:[%s3] sm:$0xff]
      %v487 = vld [vmem:[%s3 + $0x8] sm:$0xf]
      %v488 = vld [vmem:[%s3 + $0xc] sm:$0xff]
      %v489 = vld [vmem:[%s3 + $0x14] sm:$0xf]
      %v490 = vld [vmem:[%s3 + $0x18] sm:$0xff]
      %v491 = vld [vmem:[%s3 + $0x20] sm:$0xf]
      %v492 = vld [vmem:[%s3 + $0x24] sm:$0xff]
      %v493 = vld [vmem:[%s3 + $0x2c] sm:$0xf]
      %v494 = vld [vmem:[%s3 + $0x30] sm:$0xff]
      %v495 = vld [vmem:[%s3 + $0x38] sm:$0xf]
      %v496 = vld [vmem:[%s3 + $0x3c] sm:$0xff]
      %v497 = vld [vmem:[%s3 + $0x44] sm:$0xf]
      %v498 = vld [vmem:[%s3 + $0x48] sm:$0xff]
      %v499 = vld [vmem:[%s3 + $0x50] sm:$0xf]
      %v500 = vld [vmem:[%s3 + $0x54] sm:$0xff]
      %v501 = vld [vmem:[%s3 + $0x5c] sm:$0xf]
      %v502 = vld [vmem:[%s3 + $0x60] sm:$0xff]
      %v503 = vld [vmem:[%s3 + $0x68] sm:$0xf]
      %v504 = vld [vmem:[%s3 + $0x6c] sm:$0xff]
      %v505 = vld [vmem:[%s3 + $0x74] sm:$0xf]
      %v506 = vld [vmem:[%s3 + $0x78] sm:$0xff]
      %v507 = vld [vmem:[%s3 + $0x80] sm:$0xf]
      %v508 = vld [vmem:[%s3 + $0x84] sm:$0xff]
      %v509 = vld [vmem:[%s3 + $0x8c] sm:$0xf]
      %v510 = vld [vmem:[%s3 + $0x90] sm:$0xff]
      %v511 = vld [vmem:[%s3 + $0x98] sm:$0xf]
      %v512 = vld [vmem:[%s3 + $0x9c] sm:$0xff]
      %v513 = vld [vmem:[%s3 + $0xa4] sm:$0xf]
      %v514 = vld [vmem:[%s3 + $0xa8] sm:$0xff]
      %v515 = vld [vmem:[%s3 + $0xb0] sm:$0xf]
      %v516 = vld [vmem:[%s3 + $0xb4] sm:$0xff]
      %v517 = vld [vmem:[%s3 + $0xbc] sm:$0xf]
      %v518 = vld [vmem:[%s5] sm:$0x7]
      %v520 = vlaneseq
      %v521 = vshrl.u32 %v520, 7
      %v522 = vsub.s32 0, %v521
      %v523 = vrot.slane %v518, %v522
      %v524 = vlaneseq
      %v525 = vshrl.u32 %v524, 7
      %v526 = vsub.s32 1, %v525
      %v527 = vrot.slane %v518, %v526
      %v528 = vlaneseq
      %v529 = vshrl.u32 %v528, 7
      %v530 = vsub.s32 2, %v529
      %v531 = vrot.slane %v518, %v530
      %v567 = vunpack.c.l.b16 %v486
      %v568 = vunpack.c.h.b16 %v486
      %v569 = vunpack.c.l.b16 %v487
      %v570 = vunpack.c.l.b16 %v488
      %v571 = vunpack.c.h.b16 %v488
      %v572 = vunpack.c.l.b16 %v489
      %v573 = vunpack.c.l.b16 %v490
      %v574 = vunpack.c.h.b16 %v490
      %v575 = vunpack.c.l.b16 %v491
      %v576 = vunpack.c.l.b16 %v492
      %v577 = vunpack.c.h.b16 %v492
      %v578 = vunpack.c.l.b16 %v493
      %v579 = vunpack.c.l.b16 %v494
      %v580 = vunpack.c.h.b16 %v494
      %v581 = vunpack.c.l.b16 %v495
      %v582 = vunpack.c.l.b16 %v496
      %v583 = vunpack.c.h.b16 %v496
      %v584 = vunpack.c.l.b16 %v497
      %v585 = vunpack.c.l.b16 %v498
      %v586 = vunpack.c.h.b16 %v498
      %v587 = vunpack.c.l.b16 %v499
      %v588 = vunpack.c.l.b16 %v500
      %v589 = vunpack.c.h.b16 %v500
      %v590 = vunpack.c.l.b16 %v501
      %v591 = vunpack.c.l.b16 %v502
      %v592 = vunpack.c.h.b16 %v502
      %v593 = vunpack.c.l.b16 %v503
      %v594 = vunpack.c.l.b16 %v504
      %v595 = vunpack.c.h.b16 %v504
      %v596 = vunpack.c.l.b16 %v505
      %v597 = vunpack.c.l.b16 %v506
      %v598 = vunpack.c.h.b16 %v506
      %v599 = vunpack.c.l.b16 %v507
      %v600 = vunpack.c.l.b16 %v508
      %v601 = vunpack.c.h.b16 %v508
      %v602 = vunpack.c.l.b16 %v509
      %v603 = vunpack.c.l.b16 %v510
      %v604 = vunpack.c.h.b16 %v510
      %v605 = vunpack.c.l.b16 %v511
      %v606 = vunpack.c.l.b16 %v512
      %v607 = vunpack.c.h.b16 %v512
      %v608 = vunpack.c.l.b16 %v513
      %v609 = vunpack.c.l.b16 %v514
      %v610 = vunpack.c.h.b16 %v514
      %v611 = vunpack.c.l.b16 %v515
      %v612 = vunpack.c.l.b16 %v516
      %v613 = vunpack.c.h.b16 %v516
      %v614 = vunpack.c.l.b16 %v517
      %v615 = vpack.c.b16 %v570, %v567
      %v616 = vpack.c.b16 %v571, %v568
      %v617 = vpack.c.b16 %v572, %v569
      %v618 = vpack.c.b16 %v576, %v573
      %v619 = vpack.c.b16 %v577, %v574
      %v620 = vpack.c.b16 %v578, %v575
      %v621 = vpack.c.b16 %v582, %v579
      %v622 = vpack.c.b16 %v583, %v580
      %v623 = vpack.c.b16 %v584, %v581
      %v624 = vpack.c.b16 %v588, %v585
      %v625 = vpack.c.b16 %v589, %v586
      %v626 = vpack.c.b16 %v590, %v587
      %v627 = vpack.c.b16 %v594, %v591
      %v628 = vpack.c.b16 %v595, %v592
      %v629 = vpack.c.b16 %v596, %v593
      %v630 = vpack.c.b16 %v600, %v597
      %v631 = vpack.c.b16 %v601, %v598
      %v632 = vpack.c.b16 %v602, %v599
      %v633 = vpack.c.b16 %v606, %v603
      %v634 = vpack.c.b16 %v607, %v604
      %v635 = vpack.c.b16 %v608, %v605
      %v636 = vpack.c.b16 %v612, %v609
      %v637 = vpack.c.b16 %v613, %v610
      %v638 = vpack.c.b16 %v614, %v611
      %663 = vmatprep.subr.bf16.mxu0 %v616
      %664 = vmatpush1.bf16.msra.mxu0 %v615
      %665 = vmatprep.subr.bf16.mxu0 %v619
      %666 = vmatpush1.bf16.msra.mxu0 %v618
      %667 = vmatprep.subr.bf16.mxu0 %v622
      %668 = vmatpush1.bf16.msra.mxu0 %v621
      %669 = vmatprep.subr.bf16.mxu0 %v625
      %670 = vmatpush1.bf16.msra.mxu0 %v624
      %671 = vmatprep.subr.bf16.mxu0 %v628
      %672 = vmatpush1.bf16.msra.mxu0 %v627
      %673 = vmatprep.subr.bf16.mxu0 %v631
      %674 = vmatpush1.bf16.msra.mxu0 %v630
      %675 = vmatprep.subr.bf16.mxu0 %v634
      %676 = vmatpush1.bf16.msra.mxu0 %v633
      %677 = vmatprep.subr.bf16.mxu0 %v637
      %678 = vmatpush1.bf16.msra.mxu0 %v636
      %679 = vmatprep.subr.bf16.mxu0 0
      %680 = vmatpush1.bf16.msra.mxu0 0
      %681 = vmatprep.subr.bf16.mxu0 0
      %682 = vmatpush1.bf16.msra.mxu0 0
      %683 = vmatprep.subr.bf16.mxu0 0
      %684 = vmatpush1.bf16.msra.mxu0 0
      %685 = vmatprep.subr.bf16.mxu0 0
      %686 = vmatpush1.bf16.msra.mxu0 0
      %687 = vmatprep.subr.bf16.mxu0 0
      %688 = vmatpush1.bf16.msra.mxu0 0
      %689 = vmatprep.subr.bf16.mxu0 0
      %690 = vmatpush1.bf16.msra.mxu0 0
      %691 = vmatprep.subr.bf16.mxu0 0
      %692 = vmatpush1.bf16.msra.mxu0 0
      %693 = vmatprep.subr.bf16.mxu0 0
      %694 = vmatpush1.bf16.msra.mxu0 0
      %695 = vmatprep.mubr.bf16.mxu0 0
      %696 = vmatmul.mubr.bf16.gmra.mrb[0].mxu0 %v485
      %v697 = vpop.f32.mrb[0].mxu0
      %v698 = vadd.f32 %v523, %v697
      %v699 = vpop.f32.mrb[0].mxu0
      %v700 = vadd.f32 %v527, %v699
      %v701 = vpop.f32.mrb[0].mxu0
      %v702 = vadd.f32 %v523, %v701
      %v703 = vpop.f32.mrb[0].mxu0
      %v704 = vadd.f32 %v527, %v703
      %705 = vdwg.mxu0
      %706 = vmatprep.subr.bf16.mxu0 0
      %707 = vmatpush1.bf16.msra.mxu0 %v617
      %708 = vmatprep.subr.bf16.mxu0 0
      %709 = vmatpush1.bf16.msra.mxu0 %v620
      %710 = vmatprep.subr.bf16.mxu0 0
      %711 = vmatpush1.bf16.msra.mxu0 %v623
      %712 = vmatprep.subr.bf16.mxu0 0
      %713 = vmatpush1.bf16.msra.mxu0 %v626
      %714 = vmatprep.subr.bf16.mxu0 0
      %715 = vmatpush1.bf16.msra.mxu0 %v629
      %716 = vmatprep.subr.bf16.mxu0 0
      %717 = vmatpush1.bf16.msra.mxu0 %v632
      %718 = vmatprep.subr.bf16.mxu0 0
      %719 = vmatpush1.bf16.msra.mxu0 %v635
      %720 = vmatprep.subr.bf16.mxu0 0
      %721 = vmatpush1.bf16.msra.mxu0 %v638
      %722 = vmatprep.subr.bf16.mxu0 0
      %723 = vmatpush1.bf16.msra.mxu0 0
      %724 = vmatprep.subr.bf16.mxu0 0
      %725 = vmatpush1.bf16.msra.mxu0 0
      %726 = vmatprep.subr.bf16.mxu0 0
      %727 = vmatpush1.bf16.msra.mxu0 0
      %728 = vmatprep.subr.bf16.mxu0 0
      %729 = vmatpush1.bf16.msra.mxu0 0
      %730 = vmatprep.subr.bf16.mxu0 0
      %731 = vmatpush1.bf16.msra.mxu0 0
      %732 = vmatprep.subr.bf16.mxu0 0
      %733 = vmatpush1.bf16.msra.mxu0 0
      %734 = vmatprep.subr.bf16.mxu0 0
      %735 = vmatpush1.bf16.msra.mxu0 0
      %736 = vmatprep.subr.bf16.mxu0 0
      %737 = vmatpush1.bf16.msra.mxu0 0
      %738 = vmatprep.mubr.bf16.mxu0 0
      %739 = vmatmul.mubr.bf16.gmra.mrb[0].mxu0 %v485
      %v740 = vpop.f32.mrb[0].mxu0
      %v741 = vadd.f32 %v531, %v740
      %v742 = vpop.f32.mrb[0].mxu0
      %v743 = vpop.f32.mrb[0].mxu0
      %v744 = vadd.f32 %v531, %v743
      %v745 = vpop.f32.mrb[0].mxu0
      %746 = vdwg.mxu0
      %v747 = vadd.f32 %v436, %v698
      %v748 = vadd.f32 %v440, %v702
      %v749 = vxor.u32 %v747, 2147483648
      %v750 = vxor.u32 %v748, 2147483648
      %v751 = vmul.f32 %v749, 1.442695
      %v752 = vpow.pop %v751
      %v753 = vmul.f32 %v750, 1.442695
      %v754 = vpow.pop %v753
      %v755 = vadd.f32 %v752, 1.0
      %v756 = vadd.f32 %v754, 1.0
      %v757 = vrcp.pop %v755
      %v758 = vmul.f32 1.0, %v757
      %v759 = vrcp.pop %v756
      %v760 = vmul.f32 1.0, %v759
      %v761 = vadd.f32 %v438, %v700
      %v762 = vadd.f32 %v442, %v704
      %v763 = vxor.u32 %v761, 2147483648
      %v764 = vxor.u32 %v762, 2147483648
      %v765 = vmul.f32 %v763, 1.442695
      %v766 = vpow.pop %v765
      %v767 = vmul.f32 %v764, 1.442695
      %v768 = vpow.pop %v767
      %v769 = vadd.f32 %v766, 1.0
      %v770 = vadd.f32 %v768, 1.0
      %v771 = vrcp.pop %v769
      %v772 = vmul.f32 1.0, %v771
      %v773 = vrcp.pop %v770
      %v774 = vmul.f32 1.0, %v773
      %v775 = vmul.f32 %v758, %v741
      %v776 = vmul.f32 %v760, %v744
      %v777 = vadd.f32 %v479, %v775
      %v778 = vadd.f32 %v482, %v776
      %v779 = vtanh.pop %v777
      %v780 = vtanh.pop %v778
      %v781 = vsub.f32 1.0, %v772
      %v782 = vsub.f32 1.0, %v774
      %v783 = vmul.f32 %v781, %v779
      %v784 = vmul.f32 %v782, %v780
      %v785 = vmul.f32 %v772, %v52
      %v786 = vmul.f32 %v774, %v53
      %v787 = vadd.f32 %v783, %v785
      %v788 = vadd.f32 %v784, %v786
      %789 = vst [vmem:[%s9] sm:$0xff] %v787
      %790 = vst [vmem:[%s9 + $0x8] sm:$0xff] %v788
      %791 = vst [vmem:[#allocation2] sm:$0xff] %v141
      %792 = vst [vmem:[#allocation2 + $0x8] sm:$0xff] %v142
      %v793 = vpack.c.bf16 %v788, %v787
      %794 = vst [vmem:[#allocation2 + $0x10] sm:$0xff] %v793
    $region41: #{decoder_forward.1} parent=1 // pred_fallthru
      _
    %v795 = vld [vmem:[#allocation2] sm:$0xff]
    %v796 = vld [vmem:[#allocation2 + $0x8] sm:$0xff]
    %v797 = vld [vmem:[#allocation2 + $0x10] sm:$0xff]
    %v798 = vld [vmem:[#allocation3] sm:$0xff]
    %v799 = vld [vmem:[#allocation3 + $0x8] sm:$0xff]
    %v800 = vld [vmem:[#allocation3 + $0x10] sm:$0xff]
    %v801 = vld [vmem:[#allocation3 + $0x18] sm:$0xff]
    %v802 = vld [vmem:[#allocation3 + $0x20] sm:$0xff]
    %v803 = vld [vmem:[#allocation3 + $0x28] sm:$0xff]
    %v804 = vld [vmem:[#allocation3 + $0x30] sm:$0xff]
    %v805 = vld [vmem:[#allocation3 + $0x38] sm:$0xff]
    %v806 = vld [vmem:[#allocation3 + $0x40] sm:$0xff]
    %v807 = vld [vmem:[#allocation3 + $0x48] sm:$0xff]
    %v808 = vld [vmem:[#allocation3 + $0x50] sm:$0xff]
    %v809 = vld [vmem:[#allocation3 + $0x58] sm:$0xff]
    %v810 = vld [vmem:[#allocation3 + $0x60] sm:$0xff]
    %v811 = vld [vmem:[#allocation3 + $0x68] sm:$0xff]
    %v812 = vld [vmem:[#allocation3 + $0x70] sm:$0xff]
    %v813 = vld [vmem:[#allocation3 + $0x78] sm:$0xff]
    %v814 = vld [vmem:[#allocation3 + $0x80] sm:$0xff]
    %v815 = vld [vmem:[#allocation3 + $0x88] sm:$0xff]
    %v816 = vld [vmem:[#allocation3 + $0x90] sm:$0xff]
    %v817 = vld [vmem:[#allocation3 + $0x98] sm:$0xff]
    %v818 = vld [vmem:[#allocation3 + $0xa0] sm:$0xff]
    %v819 = vld [vmem:[#allocation3 + $0xa8] sm:$0xff]
    %v820 = vld [vmem:[#allocation3 + $0xb0] sm:$0xff]
    %v821 = vld [vmem:[#allocation3 + $0xb8] sm:$0xff]
    %v822 = vld [vmem:[#allocation3 + $0xc0] sm:$0xff]
    %v823 = vld [vmem:[#allocation3 + $0xc8] sm:$0xff]
    %v824 = vld [vmem:[#allocation3 + $0xd0] sm:$0xff]
    %v825 = vld [vmem:[#allocation3 + $0xd8] sm:$0xff]
    %v826 = vld [vmem:[#allocation3 + $0xe0] sm:$0xff]
    %v827 = vld [vmem:[#allocation3 + $0xe8] sm:$0xff]
    %v828 = vld [vmem:[#allocation3 + $0xf0] sm:$0xff]
    %v829 = vld [vmem:[#allocation3 + $0xf8] sm:$0xff]
    %v830 = vld [vmem:[#allocation3 + $0x100] sm:$0xff]
    %v831 = vld [vmem:[#allocation3 + $0x108] sm:$0xff]
    %v832 = vld [vmem:[#allocation3 + $0x110] sm:$0xff]
    %v833 = vld [vmem:[#allocation3 + $0x118] sm:$0xff]
    %v834 = vld [vmem:[#allocation3 + $0x120] sm:$0xff]
    %v835 = vld [vmem:[#allocation3 + $0x128] sm:$0xff]
    %v836 = vld [vmem:[#allocation3 + $0x130] sm:$0xff]
    %v837 = vld [vmem:[#allocation3 + $0x138] sm:$0xff]
    %v838 = vld [vmem:[#allocation3 + $0x140] sm:$0xff]
    %v839 = vld [vmem:[#allocation3 + $0x148] sm:$0xff]
    %v840 = vld [vmem:[#allocation3 + $0x150] sm:$0xff]
    %v841 = vld [vmem:[#allocation3 + $0x158] sm:$0xff]
    %v842 = vld [vmem:[#allocation3 + $0x160] sm:$0xff]
    %v843 = vld [vmem:[#allocation3 + $0x168] sm:$0xff]
    %v844 = vld [vmem:[#allocation3 + $0x170] sm:$0xff]
    %v845 = vld [vmem:[#allocation3 + $0x178] sm:$0xff]
    %v846 = vld [vmem:[#allocation3 + $0x180] sm:$0xff]
    %v847 = vld [vmem:[#allocation3 + $0x188] sm:$0xff]
    %v848 = vld [vmem:[#allocation3 + $0x190] sm:$0xff]
    %v849 = vld [vmem:[#allocation3 + $0x198] sm:$0xff]
    %v850 = vld [vmem:[#allocation3 + $0x1a0] sm:$0xff]
    %v851 = vld [vmem:[#allocation3 + $0x1a8] sm:$0xff]
    %v852 = vld [vmem:[#allocation3 + $0x1b0] sm:$0xff]
    %v853 = vld [vmem:[#allocation3 + $0x1b8] sm:$0xff]
    %v854 = vld [vmem:[#allocation3 + $0x1c0] sm:$0xff]
    %v855 = vld [vmem:[#allocation3 + $0x1c8] sm:$0xff]
    %v856 = vld [vmem:[#allocation3 + $0x1d0] sm:$0xff]
    %v857 = vld [vmem:[#allocation3 + $0x1d8] sm:$0xff]
    %v858 = vld [vmem:[#allocation3 + $0x1e0] sm:$0xff]
    %v859 = vld [vmem:[#allocation3 + $0x1e8] sm:$0xff]
    %v860 = vld [vmem:[#allocation3 + $0x1f0] sm:$0xff]
    %v861 = vld [vmem:[#allocation3 + $0x1f8] sm:$0xff]
    %v862 = vld [vmem:[#allocation3 + $0x200] sm:$0xff]
    %v863 = vld [vmem:[#allocation3 + $0x208] sm:$0xff]
    %v864 = vld [vmem:[#allocation3 + $0x210] sm:$0xff]
    %v865 = vld [vmem:[#allocation3 + $0x218] sm:$0xff]
    %v866 = vld [vmem:[#allocation3 + $0x220] sm:$0xff]
    %v867 = vld [vmem:[#allocation3 + $0x228] sm:$0xff]
    %v868 = vld [vmem:[#allocation3 + $0x230] sm:$0xff]
    %v869 = vld [vmem:[#allocation3 + $0x238] sm:$0xff]
    %v870 = vld [vmem:[#allocation3 + $0x240] sm:$0xff]
    %v871 = vld [vmem:[#allocation3 + $0x248] sm:$0xff]
    %v872 = vld [vmem:[#allocation3 + $0x250] sm:$0xff]
    %v873 = vld [vmem:[#allocation3 + $0x258] sm:$0xff]
    %v874 = vld [vmem:[#allocation3 + $0x260] sm:$0xff]
    %v875 = vld [vmem:[#allocation3 + $0x268] sm:$0xff]
    %v876 = vld [vmem:[#allocation3 + $0x270] sm:$0xff]
    %v877 = vld [vmem:[#allocation3 + $0x278] sm:$0xff]
    %v878 = vld [vmem:[#allocation3 + $0x280] sm:$0xff]
    %v879 = vld [vmem:[#allocation3 + $0x288] sm:$0xff]
    %v880 = vld [vmem:[#allocation3 + $0x290] sm:$0xff]
    %v881 = vld [vmem:[#allocation3 + $0x298] sm:$0xff]
    %v882 = vld [vmem:[#allocation3 + $0x2a0] sm:$0xff]
    %v883 = vld [vmem:[#allocation3 + $0x2a8] sm:$0xff]
    %v884 = vld [vmem:[#allocation3 + $0x2b0] sm:$0xff]
    %v885 = vld [vmem:[#allocation3 + $0x2b8] sm:$0xff]
    %v886 = vld [vmem:[#allocation3 + $0x2c0] sm:$0xff]
    %v887 = vld [vmem:[#allocation3 + $0x2c8] sm:$0xff]
    %v888 = vld [vmem:[#allocation3 + $0x2d0] sm:$0xff]
    %v889 = vld [vmem:[#allocation3 + $0x2d8] sm:$0xff]
    %v890 = vld [vmem:[#allocation3 + $0x2e0] sm:$0xff]
    %v891 = vld [vmem:[#allocation3 + $0x2e8] sm:$0xff]
    %v892 = vld [vmem:[#allocation3 + $0x2f0] sm:$0xff]
    %v893 = vld [vmem:[#allocation3 + $0x2f8] sm:$0xff]
    %v894 = vld [vmem:[#allocation3 + $0x300] sm:$0xff]
    %v895 = vld [vmem:[#allocation3 + $0x308] sm:$0xff]
    %v896 = vld [vmem:[#allocation3 + $0x310] sm:$0xff]
    %v897 = vld [vmem:[#allocation3 + $0x318] sm:$0xff]
    %v898 = vld [vmem:[#allocation3 + $0x320] sm:$0xff]
    %v899 = vld [vmem:[#allocation3 + $0x328] sm:$0xff]
    %v900 = vld [vmem:[#allocation3 + $0x330] sm:$0xff]
    %v901 = vld [vmem:[#allocation3 + $0x338] sm:$0xff]
    %v902 = vld [vmem:[#allocation3 + $0x340] sm:$0xff]
    %v903 = vld [vmem:[#allocation3 + $0x348] sm:$0xff]
    %v904 = vld [vmem:[#allocation3 + $0x350] sm:$0xff]
    %v905 = vld [vmem:[#allocation3 + $0x358] sm:$0xff]
    %v906 = vld [vmem:[#allocation3 + $0x360] sm:$0xff]
    %v907 = vld [vmem:[#allocation3 + $0x368] sm:$0xff]
    %v908 = vld [vmem:[#allocation3 + $0x370] sm:$0xff]
    %v909 = vld [vmem:[#allocation3 + $0x378] sm:$0xff]
    %v910 = vld [vmem:[#allocation3 + $0x380] sm:$0xff]
    %v911 = vld [vmem:[#allocation3 + $0x388] sm:$0xff]
    %v912 = vld [vmem:[#allocation3 + $0x390] sm:$0xff]
    %v913 = vld [vmem:[#allocation3 + $0x398] sm:$0xff]
    %v914 = vld [vmem:[#allocation3 + $0x3a0] sm:$0xff]
    %v915 = vld [vmem:[#allocation3 + $0x3a8] sm:$0xff]
    %v916 = vld [vmem:[#allocation3 + $0x3b0] sm:$0xff]
    %v917 = vld [vmem:[#allocation3 + $0x3b8] sm:$0xff]
    %v918 = vld [vmem:[#allocation3 + $0x3c0] sm:$0xff]
    %v919 = vld [vmem:[#allocation3 + $0x3c8] sm:$0xff]
    %v920 = vld [vmem:[#allocation3 + $0x3d0] sm:$0xff]
    %v921 = vld [vmem:[#allocation3 + $0x3d8] sm:$0xff]
    %v922 = vld [vmem:[#allocation3 + $0x3e0] sm:$0xff]
    %v923 = vld [vmem:[#allocation3 + $0x3e8] sm:$0xff]
    %v924 = vld [vmem:[#allocation3 + $0x3f0] sm:$0xff]
    %v925 = vld [vmem:[#allocation3 + $0x3f8] sm:$0xff]
    %v926 = vld [vmem:[#allocation3 + $0x400] sm:$0xff]
    %v927 = vld [vmem:[#allocation3 + $0x408] sm:$0xff]
    %v928 = vld [vmem:[#allocation3 + $0x410] sm:$0xff]
    %v929 = vld [vmem:[#allocation3 + $0x418] sm:$0xff]
    %v930 = vld [vmem:[#allocation3 + $0x420] sm:$0xff]
    %v931 = vld [vmem:[#allocation3 + $0x428] sm:$0xff]
    %v932 = vld [vmem:[#allocation3 + $0x430] sm:$0xff]
    %v933 = vld [vmem:[#allocation3 + $0x438] sm:$0xff]
    %v934 = vld [vmem:[#allocation3 + $0x440] sm:$0xff]
    %v935 = vld [vmem:[#allocation3 + $0x448] sm:$0xff]
    %v936 = vld [vmem:[#allocation3 + $0x450] sm:$0xff]
    %v937 = vld [vmem:[#allocation3 + $0x458] sm:$0xff]
    %v938 = vld [vmem:[#allocation3 + $0x460] sm:$0xff]
    %v939 = vld [vmem:[#allocation3 + $0x468] sm:$0xff]
    %v940 = vld [vmem:[#allocation3 + $0x470] sm:$0xff]
    %v941 = vld [vmem:[#allocation3 + $0x478] sm:$0xff]
    %v942 = vld [vmem:[#allocation3 + $0x480] sm:$0xff]
    %v943 = vld [vmem:[#allocation3 + $0x488] sm:$0xff]
    %v944 = vld [vmem:[#allocation3 + $0x490] sm:$0xff]
    %v945 = vld [vmem:[#allocation3 + $0x498] sm:$0xff]
    %v946 = vld [vmem:[#allocation3 + $0x4a0] sm:$0xff]
    %v947 = vld [vmem:[#allocation3 + $0x4a8] sm:$0xff]
    %v948 = vld [vmem:[#allocation3 + $0x4b0] sm:$0xff]
    %v949 = vld [vmem:[#allocation3 + $0x4b8] sm:$0xff]
    %v950 = vld [vmem:[#allocation3 + $0x4c0] sm:$0xff]
    %v951 = vld [vmem:[#allocation3 + $0x4c8] sm:$0xff]
    %v952 = vld [vmem:[#allocation3 + $0x4d0] sm:$0xff]
    %v953 = vld [vmem:[#allocation3 + $0x4d8] sm:$0xff]
    %v954 = vld [vmem:[#allocation3 + $0x4e0] sm:$0xff]
    %v955 = vld [vmem:[#allocation3 + $0x4e8] sm:$0xff]
    %v956 = vld [vmem:[#allocation3 + $0x4f0] sm:$0xff]
    %v957 = vld [vmem:[#allocation3 + $0x4f8] sm:$0xff]
    %v958 = vld [vmem:[#allocation3 + $0x500] sm:$0xff]
    %v959 = vld [vmem:[#allocation3 + $0x508] sm:$0xff]
    %v960 = vld [vmem:[#allocation3 + $0x510] sm:$0xff]
    %v961 = vld [vmem:[#allocation3 + $0x518] sm:$0xff]
    %v962 = vld [vmem:[#allocation3 + $0x520] sm:$0xff]
    %v963 = vld [vmem:[#allocation3 + $0x528] sm:$0xff]
    %v964 = vld [vmem:[#allocation3 + $0x530] sm:$0xff]
    %v965 = vld [vmem:[#allocation3 + $0x538] sm:$0xff]
    %v966 = vld [vmem:[#allocation3 + $0x540] sm:$0xff]
    %v967 = vld [vmem:[#allocation3 + $0x548] sm:$0xff]
    %v968 = vld [vmem:[#allocation3 + $0x550] sm:$0xff]
    %v969 = vld [vmem:[#allocation3 + $0x558] sm:$0xff]
    %v970 = vld [vmem:[#allocation3 + $0x560] sm:$0xff]
    %v971 = vld [vmem:[#allocation3 + $0x568] sm:$0xff]
    %v972 = vld [vmem:[#allocation3 + $0x570] sm:$0xff]
    %v973 = vld [vmem:[#allocation3 + $0x578] sm:$0xff]
    %v974 = vld [vmem:[#allocation3 + $0x580] sm:$0xff]
    %v975 = vld [vmem:[#allocation3 + $0x588] sm:$0xff]
    %v976 = vld [vmem:[#allocation3 + $0x590] sm:$0xff]
    %v977 = vld [vmem:[#allocation3 + $0x598] sm:$0xff]
    %v978 = vld [vmem:[#allocation3 + $0x5a0] sm:$0xff]
    %v979 = vld [vmem:[#allocation3 + $0x5a8] sm:$0xff]
    %v980 = vld [vmem:[#allocation3 + $0x5b0] sm:$0xff]
    %v981 = vld [vmem:[#allocation3 + $0x5b8] sm:$0xff]
    %v982 = vld [vmem:[#allocation3 + $0x5c0] sm:$0xff]
    %v983 = vld [vmem:[#allocation3 + $0x5c8] sm:$0xff]
    %v984 = vld [vmem:[#allocation3 + $0x5d0] sm:$0xff]
    %v985 = vld [vmem:[#allocation3 + $0x5d8] sm:$0xff]
    %v986 = vld [vmem:[#allocation3 + $0x5e0] sm:$0xff]
    %v987 = vld [vmem:[#allocation3 + $0x5e8] sm:$0xff]
    %v988 = vld [vmem:[#allocation3 + $0x5f0] sm:$0xff]
    %v989 = vld [vmem:[#allocation3 + $0x5f8] sm:$0xff]
    %v990 = vld [vmem:[%s7] sm:$0xff]
    %v992 = vlaneseq
    %v993 = vshrl.u32 %v992, 7
    %v994 = vsub.s32 0, %v993
    %v995 = vrot.slane %v990, %v994
    %v996 = vlaneseq
    %v997 = vshrl.u32 %v996, 7
    %v998 = vsub.s32 1, %v997
    %v999 = vrot.slane %v990, %v998
    %v1000 = vlaneseq
    %v1001 = vshrl.u32 %v1000, 7
    %v1002 = vsub.s32 2, %v1001
    %v1003 = vrot.slane %v990, %v1002
    %v1004 = vlaneseq
    %v1005 = vshrl.u32 %v1004, 7
    %v1006 = vsub.s32 3, %v1005
    %v1007 = vrot.slane %v990, %v1006
    %v1008 = vlaneseq
    %v1009 = vshrl.u32 %v1008, 7
    %v1010 = vsub.s32 4, %v1009
    %v1011 = vrot.slane %v990, %v1010
    %v1012 = vlaneseq
    %v1013 = vshrl.u32 %v1012, 7
    %v1014 = vsub.s32 5, %v1013
    %v1015 = vrot.slane %v990, %v1014
    %v1016 = vlaneseq
    %v1017 = vshrl.u32 %v1016, 7
    %v1018 = vsub.s32 6, %v1017
    %v1019 = vrot.slane %v990, %v1018
    %v1020 = vlaneseq
    %v1021 = vshrl.u32 %v1020, 7
    %v1022 = vsub.s32 7, %v1021
    %v1023 = vrot.slane %v990, %v1022
    %v1224 = vunpack.c.l.b16 %v798
    %v1225 = vunpack.c.h.b16 %v798
    %v1226 = vunpack.c.l.b16 %v799
    %v1227 = vunpack.c.h.b16 %v799
    %v1228 = vunpack.c.l.b16 %v800
    %v1229 = vunpack.c.h.b16 %v800
    %v1230 = vunpack.c.l.b16 %v801
    %v1231 = vunpack.c.h.b16 %v801
    %v1232 = vunpack.c.l.b16 %v802
    %v1233 = vunpack.c.h.b16 %v802
    %v1234 = vunpack.c.l.b16 %v803
    %v1235 = vunpack.c.h.b16 %v803
    %v1236 = vunpack.c.l.b16 %v804
    %v1237 = vunpack.c.h.b16 %v804
    %v1238 = vunpack.c.l.b16 %v805
    %v1239 = vunpack.c.h.b16 %v805
    %v1240 = vunpack.c.l.b16 %v806
    %v1241 = vunpack.c.h.b16 %v806
    %v1242 = vunpack.c.l.b16 %v807
    %v1243 = vunpack.c.h.b16 %v807
    %v1244 = vunpack.c.l.b16 %v808
    %v1245 = vunpack.c.h.b16 %v808
    %v1246 = vunpack.c.l.b16 %v809
    %v1247 = vunpack.c.h.b16 %v809
    %v1248 = vunpack.c.l.b16 %v810
    %v1249 = vunpack.c.h.b16 %v810
    %v1250 = vunpack.c.l.b16 %v811
    %v1251 = vunpack.c.h.b16 %v811
    %v1252 = vunpack.c.l.b16 %v812
    %v1253 = vunpack.c.h.b16 %v812
    %v1254 = vunpack.c.l.b16 %v813
    %v1255 = vunpack.c.h.b16 %v813
    %v1256 = vunpack.c.l.b16 %v814
    %v1257 = vunpack.c.h.b16 %v814
    %v1258 = vunpack.c.l.b16 %v815
    %v1259 = vunpack.c.h.b16 %v815
    %v1260 = vunpack.c.l.b16 %v816
    %v1261 = vunpack.c.h.b16 %v816
    %v1262 = vunpack.c.l.b16 %v817
    %v1263 = vunpack.c.h.b16 %v817
    %v1264 = vunpack.c.l.b16 %v818
    %v1265 = vunpack.c.h.b16 %v818
    %v1266 = vunpack.c.l.b16 %v819
    %v1267 = vunpack.c.h.b16 %v819
    %v1268 = vunpack.c.l.b16 %v820
    %v1269 = vunpack.c.h.b16 %v820
    %v1270 = vunpack.c.l.b16 %v821
    %v1271 = vunpack.c.h.b16 %v821
    %v1272 = vunpack.c.l.b16 %v822
    %v1273 = vunpack.c.h.b16 %v822
    %v1274 = vunpack.c.l.b16 %v823
    %v1275 = vunpack.c.h.b16 %v823
    %v1276 = vunpack.c.l.b16 %v824
    %v1277 = vunpack.c.h.b16 %v824
    %v1278 = vunpack.c.l.b16 %v825
    %v1279 = vunpack.c.h.b16 %v825
    %v1280 = vunpack.c.l.b16 %v826
    %v1281 = vunpack.c.h.b16 %v826
    %v1282 = vunpack.c.l.b16 %v827
    %v1283 = vunpack.c.h.b16 %v827
    %v1284 = vunpack.c.l.b16 %v828
    %v1285 = vunpack.c.h.b16 %v828
    %v1286 = vunpack.c.l.b16 %v829
    %v1287 = vunpack.c.h.b16 %v829
    %v1288 = vunpack.c.l.b16 %v830
    %v1289 = vunpack.c.h.b16 %v830
    %v1290 = vunpack.c.l.b16 %v831
    %v1291 = vunpack.c.h.b16 %v831
    %v1292 = vunpack.c.l.b16 %v832
    %v1293 = vunpack.c.h.b16 %v832
    %v1294 = vunpack.c.l.b16 %v833
    %v1295 = vunpack.c.h.b16 %v833
    %v1296 = vunpack.c.l.b16 %v834
    %v1297 = vunpack.c.h.b16 %v834
    %v1298 = vunpack.c.l.b16 %v835
    %v1299 = vunpack.c.h.b16 %v835
    %v1300 = vunpack.c.l.b16 %v836
    %v1301 = vunpack.c.h.b16 %v836
    %v1302 = vunpack.c.l.b16 %v837
    %v1303 = vunpack.c.h.b16 %v837
    %v1304 = vunpack.c.l.b16 %v838
    %v1305 = vunpack.c.h.b16 %v838
    %v1306 = vunpack.c.l.b16 %v839
    %v1307 = vunpack.c.h.b16 %v839
    %v1308 = vunpack.c.l.b16 %v840
    %v1309 = vunpack.c.h.b16 %v840
    %v1310 = vunpack.c.l.b16 %v841
    %v1311 = vunpack.c.h.b16 %v841
    %v1312 = vunpack.c.l.b16 %v842
    %v1313 = vunpack.c.h.b16 %v842
    %v1314 = vunpack.c.l.b16 %v843
    %v1315 = vunpack.c.h.b16 %v843
    %v1316 = vunpack.c.l.b16 %v844
    %v1317 = vunpack.c.h.b16 %v844
    %v1318 = vunpack.c.l.b16 %v845
    %v1319 = vunpack.c.h.b16 %v845
    %v1320 = vunpack.c.l.b16 %v846
    %v1321 = vunpack.c.h.b16 %v846
    %v1322 = vunpack.c.l.b16 %v847
    %v1323 = vunpack.c.h.b16 %v847
    %v1324 = vunpack.c.l.b16 %v848
    %v1325 = vunpack.c.h.b16 %v848
    %v1326 = vunpack.c.l.b16 %v849
    %v1327 = vunpack.c.h.b16 %v849
    %v1328 = vunpack.c.l.b16 %v850
    %v1329 = vunpack.c.h.b16 %v850
    %v1330 = vunpack.c.l.b16 %v851
    %v1331 = vunpack.c.h.b16 %v851
    %v1332 = vunpack.c.l.b16 %v852
    %v1333 = vunpack.c.h.b16 %v852
    %v1334 = vunpack.c.l.b16 %v853
    %v1335 = vunpack.c.h.b16 %v853
    %v1336 = vunpack.c.l.b16 %v854
    %v1337 = vunpack.c.h.b16 %v854
    %v1338 = vunpack.c.l.b16 %v855
    %v1339 = vunpack.c.h.b16 %v855
    %v1340 = vunpack.c.l.b16 %v856
    %v1341 = vunpack.c.h.b16 %v856
    %v1342 = vunpack.c.l.b16 %v857
    %v1343 = vunpack.c.h.b16 %v857
    %v1344 = vunpack.c.l.b16 %v858
    %v1345 = vunpack.c.h.b16 %v858
    %v1346 = vunpack.c.l.b16 %v859
    %v1347 = vunpack.c.h.b16 %v859
    %v1348 = vunpack.c.l.b16 %v860
    %v1349 = vunpack.c.h.b16 %v860
    %v1350 = vunpack.c.l.b16 %v861
    %v1351 = vunpack.c.h.b16 %v861
    %v1352 = vunpack.c.l.b16 %v862
    %v1353 = vunpack.c.h.b16 %v862
    %v1354 = vunpack.c.l.b16 %v863
    %v1355 = vunpack.c.h.b16 %v863
    %v1356 = vunpack.c.l.b16 %v864
    %v1357 = vunpack.c.h.b16 %v864
    %v1358 = vunpack.c.l.b16 %v865
    %v1359 = vunpack.c.h.b16 %v865
    %v1360 = vunpack.c.l.b16 %v866
    %v1361 = vunpack.c.h.b16 %v866
    %v1362 = vunpack.c.l.b16 %v867
    %v1363 = vunpack.c.h.b16 %v867
    %v1364 = vunpack.c.l.b16 %v868
    %v1365 = vunpack.c.h.b16 %v868
    %v1366 = vunpack.c.l.b16 %v869
    %v1367 = vunpack.c.h.b16 %v869
    %v1368 = vunpack.c.l.b16 %v870
    %v1369 = vunpack.c.h.b16 %v870
    %v1370 = vunpack.c.l.b16 %v871
    %v1371 = vunpack.c.h.b16 %v871
    %v1372 = vunpack.c.l.b16 %v872
    %v1373 = vunpack.c.h.b16 %v872
    %v1374 = vunpack.c.l.b16 %v873
    %v1375 = vunpack.c.h.b16 %v873
    %v1376 = vunpack.c.l.b16 %v874
    %v1377 = vunpack.c.h.b16 %v874
    %v1378 = vunpack.c.l.b16 %v875
    %v1379 = vunpack.c.h.b16 %v875
    %v1380 = vunpack.c.l.b16 %v876
    %v1381 = vunpack.c.h.b16 %v876
    %v1382 = vunpack.c.l.b16 %v877
    %v1383 = vunpack.c.h.b16 %v877
    %v1384 = vunpack.c.l.b16 %v878
    %v1385 = vunpack.c.h.b16 %v878
    %v1386 = vunpack.c.l.b16 %v879
    %v1387 = vunpack.c.h.b16 %v879
    %v1388 = vunpack.c.l.b16 %v880
    %v1389 = vunpack.c.h.b16 %v880
    %v1390 = vunpack.c.l.b16 %v881
    %v1391 = vunpack.c.h.b16 %v881
    %v1392 = vunpack.c.l.b16 %v882
    %v1393 = vunpack.c.h.b16 %v882
    %v1394 = vunpack.c.l.b16 %v883
    %v1395 = vunpack.c.h.b16 %v883
    %v1396 = vunpack.c.l.b16 %v884
    %v1397 = vunpack.c.h.b16 %v884
    %v1398 = vunpack.c.l.b16 %v885
    %v1399 = vunpack.c.h.b16 %v885
    %v1400 = vunpack.c.l.b16 %v886
    %v1401 = vunpack.c.h.b16 %v886
    %v1402 = vunpack.c.l.b16 %v887
    %v1403 = vunpack.c.h.b16 %v887
    %v1404 = vunpack.c.l.b16 %v888
    %v1405 = vunpack.c.h.b16 %v888
    %v1406 = vunpack.c.l.b16 %v889
    %v1407 = vunpack.c.h.b16 %v889
    %v1408 = vunpack.c.l.b16 %v890
    %v1409 = vunpack.c.h.b16 %v890
    %v1410 = vunpack.c.l.b16 %v891
    %v1411 = vunpack.c.h.b16 %v891
    %v1412 = vunpack.c.l.b16 %v892
    %v1413 = vunpack.c.h.b16 %v892
    %v1414 = vunpack.c.l.b16 %v893
    %v1415 = vunpack.c.h.b16 %v893
    %v1416 = vunpack.c.l.b16 %v894
    %v1417 = vunpack.c.h.b16 %v894
    %v1418 = vunpack.c.l.b16 %v895
    %v1419 = vunpack.c.h.b16 %v895
    %v1420 = vunpack.c.l.b16 %v896
    %v1421 = vunpack.c.h.b16 %v896
    %v1422 = vunpack.c.l.b16 %v897
    %v1423 = vunpack.c.h.b16 %v897
    %v1424 = vunpack.c.l.b16 %v898
    %v1425 = vunpack.c.h.b16 %v898
    %v1426 = vunpack.c.l.b16 %v899
    %v1427 = vunpack.c.h.b16 %v899
    %v1428 = vunpack.c.l.b16 %v900
    %v1429 = vunpack.c.h.b16 %v900
    %v1430 = vunpack.c.l.b16 %v901
    %v1431 = vunpack.c.h.b16 %v901
    %v1432 = vunpack.c.l.b16 %v902
    %v1433 = vunpack.c.h.b16 %v902
    %v1434 = vunpack.c.l.b16 %v903
    %v1435 = vunpack.c.h.b16 %v903
    %v1436 = vunpack.c.l.b16 %v904
    %v1437 = vunpack.c.h.b16 %v904
    %v1438 = vunpack.c.l.b16 %v905
    %v1439 = vunpack.c.h.b16 %v905
    %v1440 = vunpack.c.l.b16 %v906
    %v1441 = vunpack.c.h.b16 %v906
    %v1442 = vunpack.c.l.b16 %v907
    %v1443 = vunpack.c.h.b16 %v907
    %v1444 = vunpack.c.l.b16 %v908
    %v1445 = vunpack.c.h.b16 %v908
    %v1446 = vunpack.c.l.b16 %v909
    %v1447 = vunpack.c.h.b16 %v909
    %v1448 = vunpack.c.l.b16 %v910
    %v1449 = vunpack.c.h.b16 %v910
    %v1450 = vunpack.c.l.b16 %v911
    %v1451 = vunpack.c.h.b16 %v911
    %v1452 = vunpack.c.l.b16 %v912
    %v1453 = vunpack.c.h.b16 %v912
    %v1454 = vunpack.c.l.b16 %v913
    %v1455 = vunpack.c.h.b16 %v913
    %v1456 = vunpack.c.l.b16 %v914
    %v1457 = vunpack.c.h.b16 %v914
    %v1458 = vunpack.c.l.b16 %v915
    %v1459 = vunpack.c.h.b16 %v915
    %v1460 = vunpack.c.l.b16 %v916
    %v1461 = vunpack.c.h.b16 %v916
    %v1462 = vunpack.c.l.b16 %v917
    %v1463 = vunpack.c.h.b16 %v917
    %v1464 = vunpack.c.l.b16 %v918
    %v1465 = vunpack.c.h.b16 %v918
    %v1466 = vunpack.c.l.b16 %v919
    %v1467 = vunpack.c.h.b16 %v919
    %v1468 = vunpack.c.l.b16 %v920
    %v1469 = vunpack.c.h.b16 %v920
    %v1470 = vunpack.c.l.b16 %v921
    %v1471 = vunpack.c.h.b16 %v921
    %v1472 = vunpack.c.l.b16 %v922
    %v1473 = vunpack.c.h.b16 %v922
    %v1474 = vunpack.c.l.b16 %v923
    %v1475 = vunpack.c.h.b16 %v923
    %v1476 = vunpack.c.l.b16 %v924
    %v1477 = vunpack.c.h.b16 %v924
    %v1478 = vunpack.c.l.b16 %v925
    %v1479 = vunpack.c.h.b16 %v925
    %v1480 = vunpack.c.l.b16 %v926
    %v1481 = vunpack.c.h.b16 %v926
    %v1482 = vunpack.c.l.b16 %v927
    %v1483 = vunpack.c.h.b16 %v927
    %v1484 = vunpack.c.l.b16 %v928
    %v1485 = vunpack.c.h.b16 %v928
    %v1486 = vunpack.c.l.b16 %v929
    %v1487 = vunpack.c.h.b16 %v929
    %v1488 = vunpack.c.l.b16 %v930
    %v1489 = vunpack.c.h.b16 %v930
    %v1490 = vunpack.c.l.b16 %v931
    %v1491 = vunpack.c.h.b16 %v931
    %v1492 = vunpack.c.l.b16 %v932
    %v1493 = vunpack.c.h.b16 %v932
    %v1494 = vunpack.c.l.b16 %v933
    %v1495 = vunpack.c.h.b16 %v933
    %v1496 = vunpack.c.l.b16 %v934
    %v1497 = vunpack.c.h.b16 %v934
    %v1498 = vunpack.c.l.b16 %v935
    %v1499 = vunpack.c.h.b16 %v935
    %v1500 = vunpack.c.l.b16 %v936
    %v1501 = vunpack.c.h.b16 %v936
    %v1502 = vunpack.c.l.b16 %v937
    %v1503 = vunpack.c.h.b16 %v937
    %v1504 = vunpack.c.l.b16 %v938
    %v1505 = vunpack.c.h.b16 %v938
    %v1506 = vunpack.c.l.b16 %v939
    %v1507 = vunpack.c.h.b16 %v939
    %v1508 = vunpack.c.l.b16 %v940
    %v1509 = vunpack.c.h.b16 %v940
    %v1510 = vunpack.c.l.b16 %v941
    %v1511 = vunpack.c.h.b16 %v941
    %v1512 = vunpack.c.l.b16 %v942
    %v1513 = vunpack.c.h.b16 %v942
    %v1514 = vunpack.c.l.b16 %v943
    %v1515 = vunpack.c.h.b16 %v943
    %v1516 = vunpack.c.l.b16 %v944
    %v1517 = vunpack.c.h.b16 %v944
    %v1518 = vunpack.c.l.b16 %v945
    %v1519 = vunpack.c.h.b16 %v945
    %v1520 = vunpack.c.l.b16 %v946
    %v1521 = vunpack.c.h.b16 %v946
    %v1522 = vunpack.c.l.b16 %v947
    %v1523 = vunpack.c.h.b16 %v947
    %v1524 = vunpack.c.l.b16 %v948
    %v1525 = vunpack.c.h.b16 %v948
    %v1526 = vunpack.c.l.b16 %v949
    %v1527 = vunpack.c.h.b16 %v949
    %v1528 = vunpack.c.l.b16 %v950
    %v1529 = vunpack.c.h.b16 %v950
    %v1530 = vunpack.c.l.b16 %v951
    %v1531 = vunpack.c.h.b16 %v951
    %v1532 = vunpack.c.l.b16 %v952
    %v1533 = vunpack.c.h.b16 %v952
    %v1534 = vunpack.c.l.b16 %v953
    %v1535 = vunpack.c.h.b16 %v953
    %v1536 = vunpack.c.l.b16 %v954
    %v1537 = vunpack.c.h.b16 %v954
    %v1538 = vunpack.c.l.b16 %v955
    %v1539 = vunpack.c.h.b16 %v955
    %v1540 = vunpack.c.l.b16 %v956
    %v1541 = vunpack.c.h.b16 %v956
    %v1542 = vunpack.c.l.b16 %v957
    %v1543 = vunpack.c.h.b16 %v957
    %v1544 = vunpack.c.l.b16 %v958
    %v1545 = vunpack.c.h.b16 %v958
    %v1546 = vunpack.c.l.b16 %v959
    %v1547 = vunpack.c.h.b16 %v959
    %v1548 = vunpack.c.l.b16 %v960
    %v1549 = vunpack.c.h.b16 %v960
    %v1550 = vunpack.c.l.b16 %v961
    %v1551 = vunpack.c.h.b16 %v961
    %v1552 = vunpack.c.l.b16 %v962
    %v1553 = vunpack.c.h.b16 %v962
    %v1554 = vunpack.c.l.b16 %v963
    %v1555 = vunpack.c.h.b16 %v963
    %v1556 = vunpack.c.l.b16 %v964
    %v1557 = vunpack.c.h.b16 %v964
    %v1558 = vunpack.c.l.b16 %v965
    %v1559 = vunpack.c.h.b16 %v965
    %v1560 = vunpack.c.l.b16 %v966
    %v1561 = vunpack.c.h.b16 %v966
    %v1562 = vunpack.c.l.b16 %v967
    %v1563 = vunpack.c.h.b16 %v967
    %v1564 = vunpack.c.l.b16 %v968
    %v1565 = vunpack.c.h.b16 %v968
    %v1566 = vunpack.c.l.b16 %v969
    %v1567 = vunpack.c.h.b16 %v969
    %v1568 = vunpack.c.l.b16 %v970
    %v1569 = vunpack.c.h.b16 %v970
    %v1570 = vunpack.c.l.b16 %v971
    %v1571 = vunpack.c.h.b16 %v971
    %v1572 = vunpack.c.l.b16 %v972
    %v1573 = vunpack.c.h.b16 %v972
    %v1574 = vunpack.c.l.b16 %v973
    %v1575 = vunpack.c.h.b16 %v973
    %v1576 = vunpack.c.l.b16 %v974
    %v1577 = vunpack.c.h.b16 %v974
    %v1578 = vunpack.c.l.b16 %v975
    %v1579 = vunpack.c.h.b16 %v975
    %v1580 = vunpack.c.l.b16 %v976
    %v1581 = vunpack.c.h.b16 %v976
    %v1582 = vunpack.c.l.b16 %v977
    %v1583 = vunpack.c.h.b16 %v977
    %v1584 = vunpack.c.l.b16 %v978
    %v1585 = vunpack.c.h.b16 %v978
    %v1586 = vunpack.c.l.b16 %v979
    %v1587 = vunpack.c.h.b16 %v979
    %v1588 = vunpack.c.l.b16 %v980
    %v1589 = vunpack.c.h.b16 %v980
    %v1590 = vunpack.c.l.b16 %v981
    %v1591 = vunpack.c.h.b16 %v981
    %v1592 = vunpack.c.l.b16 %v982
    %v1593 = vunpack.c.h.b16 %v982
    %v1594 = vunpack.c.l.b16 %v983
    %v1595 = vunpack.c.h.b16 %v983
    %v1596 = vunpack.c.l.b16 %v984
    %v1597 = vunpack.c.h.b16 %v984
    %v1598 = vunpack.c.l.b16 %v985
    %v1599 = vunpack.c.h.b16 %v985
    %v1600 = vunpack.c.l.b16 %v986
    %v1601 = vunpack.c.h.b16 %v986
    %v1602 = vunpack.c.l.b16 %v987
    %v1603 = vunpack.c.h.b16 %v987
    %v1604 = vunpack.c.l.b16 %v988
    %v1605 = vunpack.c.h.b16 %v988
    %v1606 = vunpack.c.l.b16 %v989
    %v1607 = vunpack.c.h.b16 %v989
    %v1608 = vpack.c.b16 %v1232, %v1224
    %v1609 = vpack.c.b16 %v1233, %v1225
    %v1610 = vpack.c.b16 %v1234, %v1226
    %v1611 = vpack.c.b16 %v1235, %v1227
    %v1612 = vpack.c.b16 %v1236, %v1228
    %v1613 = vpack.c.b16 %v1237, %v1229
    %v1614 = vpack.c.b16 %v1238, %v1230
    %v1615 = vpack.c.b16 %v1239, %v1231
    %v1616 = vpack.c.b16 %v1248, %v1240
    %v1617 = vpack.c.b16 %v1249, %v1241
    %v1618 = vpack.c.b16 %v1250, %v1242
    %v1619 = vpack.c.b16 %v1251, %v1243
    %v1620 = vpack.c.b16 %v1252, %v1244
    %v1621 = vpack.c.b16 %v1253, %v1245
    %v1622 = vpack.c.b16 %v1254, %v1246
    %v1623 = vpack.c.b16 %v1255, %v1247
    %v1624 = vpack.c.b16 %v1264, %v1256
    %v1625 = vpack.c.b16 %v1265, %v1257
    %v1626 = vpack.c.b16 %v1266, %v1258
    %v1627 = vpack.c.b16 %v1267, %v1259
    %v1628 = vpack.c.b16 %v1268, %v1260
    %v1629 = vpack.c.b16 %v1269, %v1261
    %v1630 = vpack.c.b16 %v1270, %v1262
    %v1631 = vpack.c.b16 %v1271, %v1263
    %v1632 = vpack.c.b16 %v1280, %v1272
    %v1633 = vpack.c.b16 %v1281, %v1273
    %v1634 = vpack.c.b16 %v1282, %v1274
    %v1635 = vpack.c.b16 %v1283, %v1275
    %v1636 = vpack.c.b16 %v1284, %v1276
    %v1637 = vpack.c.b16 %v1285, %v1277
    %v1638 = vpack.c.b16 %v1286, %v1278
    %v1639 = vpack.c.b16 %v1287, %v1279
    %v1640 = vpack.c.b16 %v1296, %v1288
    %v1641 = vpack.c.b16 %v1297, %v1289
    %v1642 = vpack.c.b16 %v1298, %v1290
    %v1643 = vpack.c.b16 %v1299, %v1291
    %v1644 = vpack.c.b16 %v1300, %v1292
    %v1645 = vpack.c.b16 %v1301, %v1293
    %v1646 = vpack.c.b16 %v1302, %v1294
    %v1647 = vpack.c.b16 %v1303, %v1295
    %v1648 = vpack.c.b16 %v1312, %v1304
    %v1649 = vpack.c.b16 %v1313, %v1305
    %v1650 = vpack.c.b16 %v1314, %v1306
    %v1651 = vpack.c.b16 %v1315, %v1307
    %v1652 = vpack.c.b16 %v1316, %v1308
    %v1653 = vpack.c.b16 %v1317, %v1309
    %v1654 = vpack.c.b16 %v1318, %v1310
    %v1655 = vpack.c.b16 %v1319, %v1311
    %v1656 = vpack.c.b16 %v1328, %v1320
    %v1657 = vpack.c.b16 %v1329, %v1321
    %v1658 = vpack.c.b16 %v1330, %v1322
    %v1659 = vpack.c.b16 %v1331, %v1323
    %v1660 = vpack.c.b16 %v1332, %v1324
    %v1661 = vpack.c.b16 %v1333, %v1325
    %v1662 = vpack.c.b16 %v1334, %v1326
    %v1663 = vpack.c.b16 %v1335, %v1327
    %v1664 = vpack.c.b16 %v1344, %v1336
    %v1665 = vpack.c.b16 %v1345, %v1337
    %v1666 = vpack.c.b16 %v1346, %v1338
    %v1667 = vpack.c.b16 %v1347, %v1339
    %v1668 = vpack.c.b16 %v1348, %v1340
    %v1669 = vpack.c.b16 %v1349, %v1341
    %v1670 = vpack.c.b16 %v1350, %v1342
    %v1671 = vpack.c.b16 %v1351, %v1343
    %v1672 = vpack.c.b16 %v1360, %v1352
    %v1673 = vpack.c.b16 %v1361, %v1353
    %v1674 = vpack.c.b16 %v1362, %v1354
    %v1675 = vpack.c.b16 %v1363, %v1355
    %v1676 = vpack.c.b16 %v1364, %v1356
    %v1677 = vpack.c.b16 %v1365, %v1357
    %v1678 = vpack.c.b16 %v1366, %v1358
    %v1679 = vpack.c.b16 %v1367, %v1359
    %v1680 = vpack.c.b16 %v1376, %v1368
    %v1681 = vpack.c.b16 %v1377, %v1369
    %v1682 = vpack.c.b16 %v1378, %v1370
    %v1683 = vpack.c.b16 %v1379, %v1371
    %v1684 = vpack.c.b16 %v1380, %v1372
    %v1685 = vpack.c.b16 %v1381, %v1373
    %v1686 = vpack.c.b16 %v1382, %v1374
    %v1687 = vpack.c.b16 %v1383, %v1375
    %v1688 = vpack.c.b16 %v1392, %v1384
    %v1689 = vpack.c.b16 %v1393, %v1385
    %v1690 = vpack.c.b16 %v1394, %v1386
    %v1691 = vpack.c.b16 %v1395, %v1387
    %v1692 = vpack.c.b16 %v1396, %v1388
    %v1693 = vpack.c.b16 %v1397, %v1389
    %v1694 = vpack.c.b16 %v1398, %v1390
    %v1695 = vpack.c.b16 %v1399, %v1391
    %v1696 = vpack.c.b16 %v1408, %v1400
    %v1697 = vpack.c.b16 %v1409, %v1401
    %v1698 = vpack.c.b16 %v1410, %v1402
    %v1699 = vpack.c.b16 %v1411, %v1403
    %v1700 = vpack.c.b16 %v1412, %v1404
    %v1701 = vpack.c.b16 %v1413, %v1405
    %v1702 = vpack.c.b16 %v1414, %v1406
    %v1703 = vpack.c.b16 %v1415, %v1407
    %v1704 = vpack.c.b16 %v1424, %v1416
    %v1705 = vpack.c.b16 %v1425, %v1417
    %v1706 = vpack.c.b16 %v1426, %v1418
    %v1707 = vpack.c.b16 %v1427, %v1419
    %v1708 = vpack.c.b16 %v1428, %v1420
    %v1709 = vpack.c.b16 %v1429, %v1421
    %v1710 = vpack.c.b16 %v1430, %v1422
    %v1711 = vpack.c.b16 %v1431, %v1423
    %v1712 = vpack.c.b16 %v1440, %v1432
    %v1713 = vpack.c.b16 %v1441, %v1433
    %v1714 = vpack.c.b16 %v1442, %v1434
    %v1715 = vpack.c.b16 %v1443, %v1435
    %v1716 = vpack.c.b16 %v1444, %v1436
    %v1717 = vpack.c.b16 %v1445, %v1437
    %v1718 = vpack.c.b16 %v1446, %v1438
    %v1719 = vpack.c.b16 %v1447, %v1439
    %v1720 = vpack.c.b16 %v1456, %v1448
    %v1721 = vpack.c.b16 %v1457, %v1449
    %v1722 = vpack.c.b16 %v1458, %v1450
    %v1723 = vpack.c.b16 %v1459, %v1451
    %v1724 = vpack.c.b16 %v1460, %v1452
    %v1725 = vpack.c.b16 %v1461, %v1453
    %v1726 = vpack.c.b16 %v1462, %v1454
    %v1727 = vpack.c.b16 %v1463, %v1455
    %v1728 = vpack.c.b16 %v1472, %v1464
    %v1729 = vpack.c.b16 %v1473, %v1465
    %v1730 = vpack.c.b16 %v1474, %v1466
    %v1731 = vpack.c.b16 %v1475, %v1467
    %v1732 = vpack.c.b16 %v1476, %v1468
    %v1733 = vpack.c.b16 %v1477, %v1469
    %v1734 = vpack.c.b16 %v1478, %v1470
    %v1735 = vpack.c.b16 %v1479, %v1471
    %v1736 = vpack.c.b16 %v1488, %v1480
    %v1737 = vpack.c.b16 %v1489, %v1481
    %v1738 = vpack.c.b16 %v1490, %v1482
    %v1739 = vpack.c.b16 %v1491, %v1483
    %v1740 = vpack.c.b16 %v1492, %v1484
    %v1741 = vpack.c.b16 %v1493, %v1485
    %v1742 = vpack.c.b16 %v1494, %v1486
    %v1743 = vpack.c.b16 %v1495, %v1487
    %v1744 = vpack.c.b16 %v1504, %v1496
    %v1745 = vpack.c.b16 %v1505, %v1497
    %v1746 = vpack.c.b16 %v1506, %v1498
    %v1747 = vpack.c.b16 %v1507, %v1499
    %v1748 = vpack.c.b16 %v1508, %v1500
    %v1749 = vpack.c.b16 %v1509, %v1501
    %v1750 = vpack.c.b16 %v1510, %v1502
    %v1751 = vpack.c.b16 %v1511, %v1503
    %v1752 = vpack.c.b16 %v1520, %v1512
    %v1753 = vpack.c.b16 %v1521, %v1513
    %v1754 = vpack.c.b16 %v1522, %v1514
    %v1755 = vpack.c.b16 %v1523, %v1515
    %v1756 = vpack.c.b16 %v1524, %v1516
    %v1757 = vpack.c.b16 %v1525, %v1517
    %v1758 = vpack.c.b16 %v1526, %v1518
    %v1759 = vpack.c.b16 %v1527, %v1519
    %v1760 = vpack.c.b16 %v1536, %v1528
    %v1761 = vpack.c.b16 %v1537, %v1529
    %v1762 = vpack.c.b16 %v1538, %v1530
    %v1763 = vpack.c.b16 %v1539, %v1531
    %v1764 = vpack.c.b16 %v1540, %v1532
    %v1765 = vpack.c.b16 %v1541, %v1533
    %v1766 = vpack.c.b16 %v1542, %v1534
    %v1767 = vpack.c.b16 %v1543, %v1535
    %v1768 = vpack.c.b16 %v1552, %v1544
    %v1769 = vpack.c.b16 %v1553, %v1545
    %v1770 = vpack.c.b16 %v1554, %v1546
    %v1771 = vpack.c.b16 %v1555, %v1547
    %v1772 = vpack.c.b16 %v1556, %v1548
    %v1773 = vpack.c.b16 %v1557, %v1549
    %v1774 = vpack.c.b16 %v1558, %v1550
    %v1775 = vpack.c.b16 %v1559, %v1551
    %v1776 = vpack.c.b16 %v1568, %v1560
    %v1777 = vpack.c.b16 %v1569, %v1561
    %v1778 = vpack.c.b16 %v1570, %v1562
    %v1779 = vpack.c.b16 %v1571, %v1563
    %v1780 = vpack.c.b16 %v1572, %v1564
    %v1781 = vpack.c.b16 %v1573, %v1565
    %v1782 = vpack.c.b16 %v1574, %v1566
    %v1783 = vpack.c.b16 %v1575, %v1567
    %v1784 = vpack.c.b16 %v1584, %v1576
    %v1785 = vpack.c.b16 %v1585, %v1577
    %v1786 = vpack.c.b16 %v1586, %v1578
    %v1787 = vpack.c.b16 %v1587, %v1579
    %v1788 = vpack.c.b16 %v1588, %v1580
    %v1789 = vpack.c.b16 %v1589, %v1581
    %v1790 = vpack.c.b16 %v1590, %v1582
    %v1791 = vpack.c.b16 %v1591, %v1583
    %v1792 = vpack.c.b16 %v1600, %v1592
    %v1793 = vpack.c.b16 %v1601, %v1593
    %v1794 = vpack.c.b16 %v1602, %v1594
    %v1795 = vpack.c.b16 %v1603, %v1595
    %v1796 = vpack.c.b16 %v1604, %v1596
    %v1797 = vpack.c.b16 %v1605, %v1597
    %v1798 = vpack.c.b16 %v1606, %v1598
    %v1799 = vpack.c.b16 %v1607, %v1599
    %1992 = vmatprep.subr.bf16.mxu0 %v1609
    %1993 = vmatpush1.bf16.msra.mxu0 %v1608
    %1994 = vmatprep.subr.bf16.mxu0 %v1617
    %1995 = vmatpush1.bf16.msra.mxu0 %v1616
    %1996 = vmatprep.subr.bf16.mxu0 %v1625
    %1997 = vmatpush1.bf16.msra.mxu0 %v1624
    %1998 = vmatprep.subr.bf16.mxu0 %v1633
    %1999 = vmatpush1.bf16.msra.mxu0 %v1632
    %2000 = vmatprep.subr.bf16.mxu0 %v1641
    %2001 = vmatpush1.bf16.msra.mxu0 %v1640
    %2002 = vmatprep.subr.bf16.mxu0 %v1649
    %2003 = vmatpush1.bf16.msra.mxu0 %v1648
    %2004 = vmatprep.subr.bf16.mxu0 %v1657
    %2005 = vmatpush1.bf16.msra.mxu0 %v1656
    %2006 = vmatprep.subr.bf16.mxu0 %v1665
    %2007 = vmatpush1.bf16.msra.mxu0 %v1664
    %2008 = vmatprep.subr.bf16.mxu0 %v1673
    %2009 = vmatpush1.bf16.msra.mxu0 %v1672
    %2010 = vmatprep.subr.bf16.mxu0 %v1681
    %2011 = vmatpush1.bf16.msra.mxu0 %v1680
    %2012 = vmatprep.subr.bf16.mxu0 %v1689
    %2013 = vmatpush1.bf16.msra.mxu0 %v1688
    %2014 = vmatprep.subr.bf16.mxu0 %v1697
    %2015 = vmatpush1.bf16.msra.mxu0 %v1696
    %2016 = vmatprep.subr.bf16.mxu0 %v1705
    %2017 = vmatpush1.bf16.msra.mxu0 %v1704
    %2018 = vmatprep.subr.bf16.mxu0 %v1713
    %2019 = vmatpush1.bf16.msra.mxu0 %v1712
    %2020 = vmatprep.subr.bf16.mxu0 %v1721
    %2021 = vmatpush1.bf16.msra.mxu0 %v1720
    %2022 = vmatprep.subr.bf16.mxu0 %v1729
    %2023 = vmatpush1.bf16.msra.mxu0 %v1728
    %2024 = vmatprep.mubr.bf16.mxu0 %v796
    %2025 = vmatmul.mubr.bf16.gmra.mrb[0].mxu0 %v795
    %v2026 = vpop.f32.mrb[0].mxu0
    %v2027 = vadd.f32 %v995, %v2026
    %v2028 = vpop.f32.mrb[0].mxu0
    %v2029 = vadd.f32 %v999, %v2028
    %v2030 = vpop.f32.mrb[0].mxu0
    %v2031 = vadd.f32 %v995, %v2030
    %v2032 = vpop.f32.mrb[0].mxu0
    %v2033 = vadd.f32 %v999, %v2032
    %2034 = vdwg.mxu0
    %2035 = vmatprep.subr.bf16.mxu0 %v1737
    %2036 = vmatpush1.bf16.msra.mxu0 %v1736
    %2037 = vmatprep.subr.bf16.mxu0 %v1745
    %2038 = vmatpush1.bf16.msra.mxu0 %v1744
    %2039 = vmatprep.subr.bf16.mxu0 %v1753
    %2040 = vmatpush1.bf16.msra.mxu0 %v1752
    %2041 = vmatprep.subr.bf16.mxu0 %v1761
    %2042 = vmatpush1.bf16.msra.mxu0 %v1760
    %2043 = vmatprep.subr.bf16.mxu0 %v1769
    %2044 = vmatpush1.bf16.msra.mxu0 %v1768
    %2045 = vmatprep.subr.bf16.mxu0 %v1777
    %2046 = vmatpush1.bf16.msra.mxu0 %v1776
    %2047 = vmatprep.subr.bf16.mxu0 %v1785
    %2048 = vmatpush1.bf16.msra.mxu0 %v1784
    %2049 = vmatprep.subr.bf16.mxu0 %v1793
    %2050 = vmatpush1.bf16.msra.mxu0 %v1792
    %2051 = vmatprep.subr.bf16.mxu0 0
    %2052 = vmatpush1.bf16.msra.mxu0 0
    %2053 = vmatprep.subr.bf16.mxu0 0
    %2054 = vmatpush1.bf16.msra.mxu0 0
    %2055 = vmatprep.subr.bf16.mxu0 0
    %2056 = vmatpush1.bf16.msra.mxu0 0
    %2057 = vmatprep.subr.bf16.mxu0 0
    %2058 = vmatpush1.bf16.msra.mxu0 0
    %2059 = vmatprep.subr.bf16.mxu0 0
    %2060 = vmatpush1.bf16.msra.mxu0 0
    %2061 = vmatprep.subr.bf16.mxu0 0
    %2062 = vmatpush1.bf16.msra.mxu0 0
    %2063 = vmatprep.subr.bf16.mxu0 0
    %2064 = vmatpush1.bf16.msra.mxu0 0
    %2065 = vmatprep.subr.bf16.mxu0 0
    %2066 = vmatpush1.bf16.msra.mxu0 0
    %2067 = vmatprep.mubr.bf16.mxu0 0
    %2068 = vmatmul.mubr.bf16.gmra.mrb[0].mxu0 %v797
    %v2069 = vpop.f32.mrb[0].mxu0
    %v2070 = vadd.f32 %v2027, %v2069
    %v2071 = vpop.f32.mrb[0].mxu0
    %v2072 = vadd.f32 %v2029, %v2071
    %v2073 = vpop.f32.mrb[0].mxu0
    %v2074 = vadd.f32 %v2031, %v2073
    %v2075 = vpop.f32.mrb[0].mxu0
    %v2076 = vadd.f32 %v2033, %v2075
    %2077 = vdwg.mxu0
    %2078 = vmatprep.subr.bf16.mxu0 %v1611
    %2079 = vmatpush1.bf16.msra.mxu0 %v1610
    %2080 = vmatprep.subr.bf16.mxu0 %v1619
    %2081 = vmatpush1.bf16.msra.mxu0 %v1618
    %2082 = vmatprep.subr.bf16.mxu0 %v1627
    %2083 = vmatpush1.bf16.msra.mxu0 %v1626
    %2084 = vmatprep.subr.bf16.mxu0 %v1635
    %2085 = vmatpush1.bf16.msra.mxu0 %v1634
    %2086 = vmatprep.subr.bf16.mxu0 %v1643
    %2087 = vmatpush1.bf16.msra.mxu0 %v1642
    %2088 = vmatprep.subr.bf16.mxu0 %v1651
    %2089 = vmatpush1.bf16.msra.mxu0 %v1650
    %2090 = vmatprep.subr.bf16.mxu0 %v1659
    %2091 = vmatpush1.bf16.msra.mxu0 %v1658
    %2092 = vmatprep.subr.bf16.mxu0 %v1667
    %2093 = vmatpush1.bf16.msra.mxu0 %v1666
    %2094 = vmatprep.subr.bf16.mxu0 %v1675
    %2095 = vmatpush1.bf16.msra.mxu0 %v1674
    %2096 = vmatprep.subr.bf16.mxu0 %v1683
    %2097 = vmatpush1.bf16.msra.mxu0 %v1682
    %2098 = vmatprep.subr.bf16.mxu0 %v1691
    %2099 = vmatpush1.bf16.msra.mxu0 %v1690
    %2100 = vmatprep.subr.bf16.mxu0 %v1699
    %2101 = vmatpush1.bf16.msra.mxu0 %v1698
    %2102 = vmatprep.subr.bf16.mxu0 %v1707
    %2103 = vmatpush1.bf16.msra.mxu0 %v1706
    %2104 = vmatprep.subr.bf16.mxu0 %v1715
    %2105 = vmatpush1.bf16.msra.mxu0 %v1714
    %2106 = vmatprep.subr.bf16.mxu0 %v1723
    %2107 = vmatpush1.bf16.msra.mxu0 %v1722
    %2108 = vmatprep.subr.bf16.mxu0 %v1731
    %2109 = vmatpush1.bf16.msra.mxu0 %v1730
    %2110 = vmatprep.mubr.bf16.mxu0 %v796
    %2111 = vmatmul.mubr.bf16.gmra.mrb[0].mxu0 %v795
    %v2112 = vpop.f32.mrb[0].mxu0
    %v2113 = vadd.f32 %v1003, %v2112
    %v2114 = vpop.f32.mrb[0].mxu0
    %v2115 = vadd.f32 %v1007, %v2114
    %v2116 = vpop.f32.mrb[0].mxu0
    %v2117 = vadd.f32 %v1003, %v2116
    %v2118 = vpop.f32.mrb[0].mxu0
    %v2119 = vadd.f32 %v1007, %v2118
    %2120 = vdwg.mxu0
    %2121 = vmatprep.subr.bf16.mxu0 %v1739
    %2122 = vmatpush1.bf16.msra.mxu0 %v1738
    %2123 = vmatprep.subr.bf16.mxu0 %v1747
    %2124 = vmatpush1.bf16.msra.mxu0 %v1746
    %2125 = vmatprep.subr.bf16.mxu0 %v1755
    %2126 = vmatpush1.bf16.msra.mxu0 %v1754
    %2127 = vmatprep.subr.bf16.mxu0 %v1763
    %2128 = vmatpush1.bf16.msra.mxu0 %v1762
    %2129 = vmatprep.subr.bf16.mxu0 %v1771
    %2130 = vmatpush1.bf16.msra.mxu0 %v1770
    %2131 = vmatprep.subr.bf16.mxu0 %v1779
    %2132 = vmatpush1.bf16.msra.mxu0 %v1778
    %2133 = vmatprep.subr.bf16.mxu0 %v1787
    %2134 = vmatpush1.bf16.msra.mxu0 %v1786
    %2135 = vmatprep.subr.bf16.mxu0 %v1795
    %2136 = vmatpush1.bf16.msra.mxu0 %v1794
    %2137 = vmatprep.subr.bf16.mxu0 0
    %2138 = vmatpush1.bf16.msra.mxu0 0
    %2139 = vmatprep.subr.bf16.mxu0 0
    %2140 = vmatpush1.bf16.msra.mxu0 0
    %2141 = vmatprep.subr.bf16.mxu0 0
    %2142 = vmatpush1.bf16.msra.mxu0 0
    %2143 = vmatprep.subr.bf16.mxu0 0
    %2144 = vmatpush1.bf16.msra.mxu0 0
    %2145 = vmatprep.subr.bf16.mxu0 0
    %2146 = vmatpush1.bf16.msra.mxu0 0
    %2147 = vmatprep.subr.bf16.mxu0 0
    %2148 = vmatpush1.bf16.msra.mxu0 0
    %2149 = vmatprep.subr.bf16.mxu0 0
    %2150 = vmatpush1.bf16.msra.mxu0 0
    %2151 = vmatprep.subr.bf16.mxu0 0
    %2152 = vmatpush1.bf16.msra.mxu0 0
    %2153 = vmatprep.mubr.bf16.mxu0 0
    %2154 = vmatmul.mubr.bf16.gmra.mrb[0].mxu0 %v797
    %v2155 = vpop.f32.mrb[0].mxu0
    %v2156 = vadd.f32 %v2113, %v2155
    %v2157 = vpop.f32.mrb[0].mxu0
    %v2158 = vadd.f32 %v2115, %v2157
    %v2159 = vpop.f32.mrb[0].mxu0
    %v2160 = vadd.f32 %v2117, %v2159
    %v2161 = vpop.f32.mrb[0].mxu0
    %v2162 = vadd.f32 %v2119, %v2161
    %2163 = vdwg.mxu0
    %2164 = vmatprep.subr.bf16.mxu0 %v1613
    %2165 = vmatpush1.bf16.msra.mxu0 %v1612
    %2166 = vmatprep.subr.bf16.mxu0 %v1621
    %2167 = vmatpush1.bf16.msra.mxu0 %v1620
    %2168 = vmatprep.subr.bf16.mxu0 %v1629
    %2169 = vmatpush1.bf16.msra.mxu0 %v1628
    %2170 = vmatprep.subr.bf16.mxu0 %v1637
    %2171 = vmatpush1.bf16.msra.mxu0 %v1636
    %2172 = vmatprep.subr.bf16.mxu0 %v1645
    %2173 = vmatpush1.bf16.msra.mxu0 %v1644
    %2174 = vmatprep.subr.bf16.mxu0 %v1653
    %2175 = vmatpush1.bf16.msra.mxu0 %v1652
    %2176 = vmatprep.subr.bf16.mxu0 %v1661
    %2177 = vmatpush1.bf16.msra.mxu0 %v1660
    %2178 = vmatprep.subr.bf16.mxu0 %v1669
    %2179 = vmatpush1.bf16.msra.mxu0 %v1668
    %2180 = vmatprep.subr.bf16.mxu0 %v1677
    %2181 = vmatpush1.bf16.msra.mxu0 %v1676
    %2182 = vmatprep.subr.bf16.mxu0 %v1685
    %2183 = vmatpush1.bf16.msra.mxu0 %v1684
    %2184 = vmatprep.subr.bf16.mxu0 %v1693
    %2185 = vmatpush1.bf16.msra.mxu0 %v1692
    %2186 = vmatprep.subr.bf16.mxu0 %v1701
    %2187 = vmatpush1.bf16.msra.mxu0 %v1700
    %2188 = vmatprep.subr.bf16.mxu0 %v1709
    %2189 = vmatpush1.bf16.msra.mxu0 %v1708
    %2190 = vmatprep.subr.bf16.mxu0 %v1717
    %2191 = vmatpush1.bf16.msra.mxu0 %v1716
    %2192 = vmatprep.subr.bf16.mxu0 %v1725
    %2193 = vmatpush1.bf16.msra.mxu0 %v1724
    %2194 = vmatprep.subr.bf16.mxu0 %v1733
    %2195 = vmatpush1.bf16.msra.mxu0 %v1732
    %2196 = vmatprep.mubr.bf16.mxu0 %v796
    %2197 = vmatmul.mubr.bf16.gmra.mrb[0].mxu0 %v795
    %v2198 = vpop.f32.mrb[0].mxu0
    %v2199 = vadd.f32 %v1011, %v2198
    %v2200 = vpop.f32.mrb[0].mxu0
    %v2201 = vadd.f32 %v1015, %v2200
    %v2202 = vpop.f32.mrb[0].mxu0
    %v2203 = vadd.f32 %v1011, %v2202
    %v2204 = vpop.f32.mrb[0].mxu0
    %v2205 = vadd.f32 %v1015, %v2204
    %2206 = vdwg.mxu0
    %2207 = vmatprep.subr.bf16.mxu0 %v1741
    %2208 = vmatpush1.bf16.msra.mxu0 %v1740
    %2209 = vmatprep.subr.bf16.mxu0 %v1749
    %2210 = vmatpush1.bf16.msra.mxu0 %v1748
    %2211 = vmatprep.subr.bf16.mxu0 %v1757
    %2212 = vmatpush1.bf16.msra.mxu0 %v1756
    %2213 = vmatprep.subr.bf16.mxu0 %v1765
    %2214 = vmatpush1.bf16.msra.mxu0 %v1764
    %2215 = vmatprep.subr.bf16.mxu0 %v1773
    %2216 = vmatpush1.bf16.msra.mxu0 %v1772
    %2217 = vmatprep.subr.bf16.mxu0 %v1781
    %2218 = vmatpush1.bf16.msra.mxu0 %v1780
    %2219 = vmatprep.subr.bf16.mxu0 %v1789
    %2220 = vmatpush1.bf16.msra.mxu0 %v1788
    %2221 = vmatprep.subr.bf16.mxu0 %v1797
    %2222 = vmatpush1.bf16.msra.mxu0 %v1796
    %2223 = vmatprep.subr.bf16.mxu0 0
    %2224 = vmatpush1.bf16.msra.mxu0 0
    %2225 = vmatprep.subr.bf16.mxu0 0
    %2226 = vmatpush1.bf16.msra.mxu0 0
    %2227 = vmatprep.subr.bf16.mxu0 0
    %2228 = vmatpush1.bf16.msra.mxu0 0
    %2229 = vmatprep.subr.bf16.mxu0 0
    %2230 = vmatpush1.bf16.msra.mxu0 0
    %2231 = vmatprep.subr.bf16.mxu0 0
    %2232 = vmatpush1.bf16.msra.mxu0 0
    %2233 = vmatprep.subr.bf16.mxu0 0
    %2234 = vmatpush1.bf16.msra.mxu0 0
    %2235 = vmatprep.subr.bf16.mxu0 0
    %2236 = vmatpush1.bf16.msra.mxu0 0
    %2237 = vmatprep.subr.bf16.mxu0 0
    %2238 = vmatpush1.bf16.msra.mxu0 0
    %2239 = vmatprep.mubr.bf16.mxu0 0
    %2240 = vmatmul.mubr.bf16.gmra.mrb[0].mxu0 %v797
    %v2241 = vpop.f32.mrb[0].mxu0
    %v2242 = vadd.f32 %v2199, %v2241
    %v2243 = vpop.f32.mrb[0].mxu0
    %v2244 = vadd.f32 %v2201, %v2243
    %v2245 = vpop.f32.mrb[0].mxu0
    %v2246 = vadd.f32 %v2203, %v2245
    %v2247 = vpop.f32.mrb[0].mxu0
    %v2248 = vadd.f32 %v2205, %v2247
    %2249 = vdwg.mxu0
    %2250 = vmatprep.subr.bf16.mxu0 %v1615
    %2251 = vmatpush1.bf16.msra.mxu0 %v1614
    %2252 = vmatprep.subr.bf16.mxu0 %v1623
    %2253 = vmatpush1.bf16.msra.mxu0 %v1622
    %2254 = vmatprep.subr.bf16.mxu0 %v1631
    %2255 = vmatpush1.bf16.msra.mxu0 %v1630
    %2256 = vmatprep.subr.bf16.mxu0 %v1639
    %2257 = vmatpush1.bf16.msra.mxu0 %v1638
    %2258 = vmatprep.subr.bf16.mxu0 %v1647
    %2259 = vmatpush1.bf16.msra.mxu0 %v1646
    %2260 = vmatprep.subr.bf16.mxu0 %v1655
    %2261 = vmatpush1.bf16.msra.mxu0 %v1654
    %2262 = vmatprep.subr.bf16.mxu0 %v1663
    %2263 = vmatpush1.bf16.msra.mxu0 %v1662
    %2264 = vmatprep.subr.bf16.mxu0 %v1671
    %2265 = vmatpush1.bf16.msra.mxu0 %v1670
    %2266 = vmatprep.subr.bf16.mxu0 %v1679
    %2267 = vmatpush1.bf16.msra.mxu0 %v1678
    %2268 = vmatprep.subr.bf16.mxu0 %v1687
    %2269 = vmatpush1.bf16.msra.mxu0 %v1686
    %2270 = vmatprep.subr.bf16.mxu0 %v1695
    %2271 = vmatpush1.bf16.msra.mxu0 %v1694
    %2272 = vmatprep.subr.bf16.mxu0 %v1703
    %2273 = vmatpush1.bf16.msra.mxu0 %v1702
    %2274 = vmatprep.subr.bf16.mxu0 %v1711
    %2275 = vmatpush1.bf16.msra.mxu0 %v1710
    %2276 = vmatprep.subr.bf16.mxu0 %v1719
    %2277 = vmatpush1.bf16.msra.mxu0 %v1718
    %2278 = vmatprep.subr.bf16.mxu0 %v1727
    %2279 = vmatpush1.bf16.msra.mxu0 %v1726
    %2280 = vmatprep.subr.bf16.mxu0 %v1735
    %2281 = vmatpush1.bf16.msra.mxu0 %v1734
    %2282 = vmatprep.mubr.bf16.mxu0 %v796
    %2283 = vmatmul.mubr.bf16.gmra.mrb[0].mxu0 %v795
    %v2284 = vpop.f32.mrb[0].mxu0
    %v2285 = vadd.f32 %v1019, %v2284
    %v2286 = vpop.f32.mrb[0].mxu0
    %v2287 = vadd.f32 %v1023, %v2286
    %v2288 = vpop.f32.mrb[0].mxu0
    %v2289 = vadd.f32 %v1019, %v2288
    %v2290 = vpop.f32.mrb[0].mxu0
    %v2291 = vadd.f32 %v1023, %v2290
    %2292 = vdwg.mxu0
    %2293 = vmatprep.subr.bf16.mxu0 %v1743
    %2294 = vmatpush1.bf16.msra.mxu0 %v1742
    %2295 = vmatprep.subr.bf16.mxu0 %v1751
    %2296 = vmatpush1.bf16.msra.mxu0 %v1750
    %2297 = vmatprep.subr.bf16.mxu0 %v1759
    %2298 = vmatpush1.bf16.msra.mxu0 %v1758
    %2299 = vmatprep.subr.bf16.mxu0 %v1767
    %2300 = vmatpush1.bf16.msra.mxu0 %v1766
    %2301 = vmatprep.subr.bf16.mxu0 %v1775
    %2302 = vmatpush1.bf16.msra.mxu0 %v1774
    %2303 = vmatprep.subr.bf16.mxu0 %v1783
    %2304 = vmatpush1.bf16.msra.mxu0 %v1782
    %2305 = vmatprep.subr.bf16.mxu0 %v1791
    %2306 = vmatpush1.bf16.msra.mxu0 %v1790
    %2307 = vmatprep.subr.bf16.mxu0 %v1799
    %2308 = vmatpush1.bf16.msra.mxu0 %v1798
    %2309 = vmatprep.subr.bf16.mxu0 0
    %2310 = vmatpush1.bf16.msra.mxu0 0
    %2311 = vmatprep.subr.bf16.mxu0 0
    %2312 = vmatpush1.bf16.msra.mxu0 0
    %2313 = vmatprep.subr.bf16.mxu0 0
    %2314 = vmatpush1.bf16.msra.mxu0 0
    %2315 = vmatprep.subr.bf16.mxu0 0
    %2316 = vmatpush1.bf16.msra.mxu0 0
    %2317 = vmatprep.subr.bf16.mxu0 0
    %2318 = vmatpush1.bf16.msra.mxu0 0
    %2319 = vmatprep.subr.bf16.mxu0 0
    %2320 = vmatpush1.bf16.msra.mxu0 0
    %2321 = vmatprep.subr.bf16.mxu0 0
    %2322 = vmatpush1.bf16.msra.mxu0 0
    %2323 = vmatprep.subr.bf16.mxu0 0
    %2324 = vmatpush1.bf16.msra.mxu0 0
    %2325 = vmatprep.mubr.bf16.mxu0 0
    %2326 = vmatmul.mubr.bf16.gmra.mrb[0].mxu0 %v797
    %v2327 = vpop.f32.mrb[0].mxu0
    %v2328 = vadd.f32 %v2285, %v2327
    %v2329 = vpop.f32.mrb[0].mxu0
    %v2330 = vadd.f32 %v2287, %v2329
    %v2331 = vpop.f32.mrb[0].mxu0
    %v2332 = vadd.f32 %v2289, %v2331
    %v2333 = vpop.f32.mrb[0].mxu0
    %v2334 = vadd.f32 %v2291, %v2333
    %2335 = vdwg.mxu0
    %2336 = vst [vmem:[%s8] sm:$0xff] %v2070
    %2337 = vst [vmem:[%s8 + $0x8] sm:$0xff] %v2072
    %2338 = vst [vmem:[%s8 + $0x10] sm:$0xff] %v2156
    %2339 = vst [vmem:[%s8 + $0x18] sm:$0xff] %v2158
    %2340 = vst [vmem:[%s8 + $0x20] sm:$0xff] %v2242
    %2341 = vst [vmem:[%s8 + $0x28] sm:$0xff] %v2244
    %2342 = vst [vmem:[%s8 + $0x30] sm:$0xff] %v2328
    %2343 = vst [vmem:[%s8 + $0x38] sm:$0xff] %v2330
    %2344 = vst [vmem:[%s8 + $0x40] sm:$0xff] %v2074
    %2345 = vst [vmem:[%s8 + $0x48] sm:$0xff] %v2076
    %2346 = vst [vmem:[%s8 + $0x50] sm:$0xff] %v2160
    %2347 = vst [vmem:[%s8 + $0x58] sm:$0xff] %v2162
    %2348 = vst [vmem:[%s8 + $0x60] sm:$0xff] %v2246
    %2349 = vst [vmem:[%s8 + $0x68] sm:$0xff] %v2248
    %2350 = vst [vmem:[%s8 + $0x70] sm:$0xff] %v2332
    %2351 = vst [vmem:[%s8 + $0x78] sm:$0xff] %v2334
    // Predicated region
    $region42: #{decoder_forward.1} parent=1 // pred_check
      _
    $region43: #{decoder_forward.1} parent=1 // pred_check_branch
      %2353 = sbr.rel (0) target = $region45
    $region44: #{decoder_forward.1} parent=1 // pred_region
      _
    $region45: #{decoder_forward.1} parent=1 // pred_fallthru
      _
    // Predicated region
    $region46: #{decoder_forward.1} parent=1 // pred_check
      _
    $region47: #{decoder_forward.1} parent=1 // pred_check_branch
      %2355 = sbr.rel (0) target = $region49
    $region48: #{decoder_forward.1} parent=1 // pred_region
      _
    $region49: #{decoder_forward.1} parent=1 // pred_fallthru
      _
    // Predicated region
    $region50: #{decoder_forward.1} parent=1 // pred_check
      _
    $region51: #{decoder_forward.1} parent=1 // pred_check_branch
      %2357 = sbr.rel (0) target = $region53
    $region52: #{decoder_forward.1} parent=1 // pred_region
      _
    $region53: #{decoder_forward.1} parent=1 // pred_fallthru
      _
    // Predicated region
    $region54: #{decoder_forward.1} parent=1 // pred_check
      _
    $region55: #{decoder_forward.1} parent=1 // pred_check_branch
      %2359 = sbr.rel (0) target = $region57
    $region56: #{decoder_forward.1} parent=1 // pred_region
      _
    $region57: #{decoder_forward.1} parent=1 // pred_fallthru
      _
    %2360 = vsyncpa [#allocation4], 1

</llo_original>
